<compile_context>
chip_gen: v5e
topology: v5e:2x2
jax: 0.10.0
libtpu: 0.0.40
codegen_flags: <defaults>
</compile_context>

<pallas_src>
import jax
import jax.numpy as jnp
import numpy as np
from jax import lax
from jax.experimental import pallas as pl
from jax.experimental.pallas import tpu as pltpu

# ---------------- model hyper-params (consistent with the module) -----------
EMBEDDING_DIM = 32
HEAD_NUM = 4
QKV_DIM = 8                      # head_num * qkv_dim == embedding_dim
MS_HIDDEN_DIM = 16
FF_HIDDEN_DIM = 64
MIX1_INIT = (1.0 / 2.0) ** 0.5
MIX2_INIT = (1.0 / 16.0) ** 0.5
EPS = 1e-5                       # nn.InstanceNorm1d default eps

BATCH = 2
ROW_CNT = 8
COL_CNT = 12

HD = HEAD_NUM * QKV_DIM          # 32
HM = HEAD_NUM * MS_HIDDEN_DIM    # 64
NPAIR = ROW_CNT * COL_CNT        # 96  (r,c) pairs per batch element

# vec-bank row indices (small 1-D params packed into a single (10,128) array)
_BO, _G1, _BE1, _B1, _B2, _G2, _BE2, _M1B, _M2B, _W1COST = range(10)


# ---------------- the fused kernel ------------------------------------------
def _encoding_block_kernel(row_ref, col_ref, cost_ref,
                           wq_ref, wkv_ref, w1a_ref, w2m_ref,
                           wo_ref, w1_ref, w2_ref, vec_ref,
                           out_ref):
    f32 = jnp.float32
    R, C, E = ROW_CNT, COL_CNT, EMBEDDING_DIM
    H, D, F = HEAD_NUM, QKV_DIM, FF_HIDDEN_DIM
    N = NPAIR

    row = row_ref[...]          # (R, E)
    col = col_ref[...]          # (C, E)
    cost = cost_ref[...]        # (R, C)

    # ---- constant selection / grouping matrices (iota-built, once per step) ----
    # P_r[i, r]  = 1 if i // C == r           (N, R)
    # P_rT[r, i] = 1 if i // C == r           (R, N)
    # P_c[i, c]  = 1 if i %  C == c           (N, C)
    ii = lax.broadcasted_iota(jnp.int32, (N, R), 0)
    rr = lax.broadcasted_iota(jnp.int32, (N, R), 1)
    p_r = ((ii >= rr * C) & (ii < rr * C + C)).astype(f32)

    rr_t = lax.broadcasted_iota(jnp.int32, (R, N), 0)
    ii_t = lax.broadcasted_iota(jnp.int32, (R, N), 1)
    p_rT = ((ii_t >= rr_t * C) & (ii_t < rr_t * C + C)).astype(f32)

    r_of_i = jnp.sum(p_r * rr.astype(f32), axis=1, keepdims=True)       # (N,1) = i // C
    c_of_i = ii[:, :1].astype(f32) - C * r_of_i                         # (N,1) = i %  C
    cc = lax.broadcasted_iota(jnp.int32, (N, C), 1).astype(f32)
    p_c = (jnp.abs(c_of_i - cc) < 0.5).astype(f32)                      # (N, C)

    # per-head group-sum (with 1/sqrt(D) folded in) and head-broadcast matrices
    jj = lax.broadcasted_iota(jnp.int32, (HD, H), 0)
    hh = lax.broadcasted_iota(jnp.int32, (HD, H), 1)
    inv_sqrt_d = 1.0 / (D ** 0.5)
    g_sum = ((jj >= hh * D) & (jj < hh * D + D)).astype(f32) * inv_sqrt_d   # (HD, H)

    hh2 = lax.broadcasted_iota(jnp.int32, (H, HD), 0)
    jj2 = lax.broadcasted_iota(jnp.int32, (H, HD), 1)
    g_bcast = ((jj2 >= hh2 * D) & (jj2 < hh2 * D + D)).astype(f32)          # (H, HD)

    # ---- projections (K and V fused into one matmul) ----
    q = jnp.dot(row, wq_ref[...], preferred_element_type=f32)           # (R, HD)
    kv = jnp.dot(col, wkv_ref[...], preferred_element_type=f32)         # (C, 2*HD)

    # ---- expand to the (N, .) pair-row layout: row i <-> (r_i, c_i) ----
    q_exp = jnp.dot(p_r, q, preferred_element_type=f32)                 # (N, HD)  q[r_i]
    kv_exp = jnp.dot(p_c, kv, preferred_element_type=f32)               # (N, 2HD) kv[c_i]
    k_exp = kv_exp[:, :HD]
    v_exp = kv_exp[:, HD:]
    cost_rows = jnp.dot(p_r, cost, preferred_element_type=f32)          # (N, C)
    cost_flat = jnp.sum(cost_rows * p_c, axis=1, keepdims=True)         # (N, 1) cost[r_i,c_i]

    # ---- all-head dot-product scores via one masked group-sum matmul ----
    dp_cols = jnp.dot(q_exp * k_exp, g_sum, preferred_element_type=f32)  # (N, H)

    # ---- mixed-score MLP as two block-diagonal MXU matmuls ----
    w1_cost = vec_ref[_W1COST:_W1COST + 1, :HM]      # (1, HM) cost-score weights
    m1_bias = vec_ref[_M1B:_M1B + 1, :HM]            # (1, HM)
    m2_bias = vec_ref[_M2B:_M2B + 1, :H]             # (1, H)
    ms1 = (jnp.dot(dp_cols, w1a_ref[...], preferred_element_type=f32)
           + cost_flat * w1_cost + m1_bias)          # (N, HM)
    ms1 = jnp.maximum(ms1, 0.0)
    ms2 = jnp.dot(ms1, w2m_ref[...], preferred_element_type=f32) + m2_bias   # (N, H)

    # ---- single softmax over the column axis of every (row, head) group ----
    # Shared per-head shift: constant within each group => exact softmax; stable
    # unless a group's scores are ~80 below the per-head max (impossible here).
    shift = jnp.max(ms2, axis=0, keepdims=True)                         # (1, H)
    e = jnp.exp(ms2 - shift)                                            # (N, H)
    group_sum = jnp.dot(p_r, jnp.dot(p_rT, e, preferred_element_type=f32),
                        preferred_element_type=f32)                     # (N, H)
    attn = e * pl.reciprocal(group_sum, approx=True)                    # (N, H)

    # ---- attn @ V for all heads + head concat, matmuls only ----
    a_exp = jnp.dot(attn, g_bcast, preferred_element_type=f32)          # (N, HD)
    out_concat = jnp.dot(p_rT, a_exp * v_exp, preferred_element_type=f32)  # (R, HD)

    bo = vec_ref[_BO:_BO + 1, :E]
    mh = jnp.dot(out_concat, wo_ref[...], preferred_element_type=f32) + bo  # (R, E)

    # ---- Add & InstanceNorm (normalize over R, per embedding channel) ----
    def add_inorm(x, g_row, b_row):
        mean = jnp.mean(x, axis=0, keepdims=True)
        var = jnp.mean((x - mean) ** 2, axis=0, keepdims=True)   # biased, like InstanceNorm1d
        return (x - mean) * lax.rsqrt(var + EPS) * g_row + b_row

    out1 = add_inorm(row + mh,
                     vec_ref[_G1:_G1 + 1, :E], vec_ref[_BE1:_BE1 + 1, :E])   # (R, E)

    # ---- feed forward ----
    h1 = jnp.dot(out1, w1_ref[...], preferred_element_type=f32) + vec_ref[_B1:_B1 + 1, :F]
    h1 = jnp.maximum(h1, 0.0)
    ff = jnp.dot(h1, w2_ref[...], preferred_element_type=f32) + vec_ref[_B2:_B2 + 1, :E]

    out_ref[...] = add_inorm(out1 + ff,
                             vec_ref[_G2:_G2 + 1, :E], vec_ref[_BE2:_BE2 + 1, :E])


# ---------------- wrapper -----------------------------------------------------
@jax.jit
def encoding_block(row_emb, col_emb, cost_mat, params):
    B, R, E = row_emb.shape
    C = col_emb.shape[1]
    H, M = HEAD_NUM, MS_HIDDEN_DIM

    # --- host-side packing: fused K|V, block-diagonal mixed-score weights ---
    wkv = jnp.concatenate([params["wk"], params["wv"]], axis=1)          # (E, 2HD)
    eye_h = jnp.eye(H, dtype=jnp.float32)
    # W1a[h', h*M + m] = mix1_weight[h, 0, m] * delta(h', h)   -> (H, H*M)
    w1a = (eye_h[:, :, None] * params["mix1_weight"][None, :, 0, :]).reshape(H, H * M)
    # W2m[h*M + m, h'] = mix2_weight[h, m, 0] * delta(h, h')   -> (H*M, H)
    w2m = (params["mix2_weight"][:, :, 0][:, :, None] * eye_h[:, None, :]).reshape(H * M, H)

    def pad128(v):
        v = jnp.asarray(v, jnp.float32).reshape(-1)
        return jnp.pad(v, (0, 128 - v.shape[0]))

    vec_bank = jnp.stack([
        pad128(params["bo"]),                    # _BO
        pad128(params["g1"]),                    # _G1
        pad128(params["be1"]),                   # _BE1
        pad128(params["b1"]),                    # _B1
        pad128(params["b2"]),                    # _B2
        pad128(params["g2"]),                    # _G2
        pad128(params["be2"]),                   # _BE2
        pad128(params["mix1_bias"]),             # _M1B
        pad128(params["mix2_bias"]),             # _M2B
        pad128(params["mix1_weight"][:, 1, :]),  # _W1COST (cost-score weights)
    ], axis=0)                                   # (10, 128)

    weights = [params["wq"], wkv, w1a, w2m,
               params["wo"], params["w1"], params["w2"], vec_bank]

    data_specs = [
        pl.BlockSpec((pl.Squeezed(), R, E), lambda b: (b, 0, 0)),
        pl.BlockSpec((pl.Squeezed(), C, E), lambda b: (b, 0, 0)),
        pl.BlockSpec((pl.Squeezed(), R, C), lambda b: (b, 0, 0)),
    ]
    weight_specs = [pl.BlockSpec(w.shape, lambda b: (0, 0)) for w in weights]

    return pl.pallas_call(
        _encoding_block_kernel,
        out_shape=jax.ShapeDtypeStruct((B, R, E), jnp.float32),
        grid_spec=pltpu.PrefetchScalarGridSpec(
            num_scalar_prefetch=0,
            grid=(B,),
            in_specs=data_specs + weight_specs,
            out_specs=pl.BlockSpec((pl.Squeezed(), R, E), lambda b: (b, 0, 0)),
        ),
        # "parallel" lets v7x shard the two batch elements across its 2 TCs;
        # neutral on single-TC v5e/v6e.
        compiler_params=pltpu.CompilerParams(
            dimension_semantics=("parallel",)),
    )(row_emb, col_emb, cost_mat, *weights)


# ---------------- pure-JAX reference (sanity check) --------------------------
def reference(row_emb, col_emb, cost_mat, p):
    B, R, E = row_emb.shape
    C = col_emb.shape[1]
    H, D, M = HEAD_NUM, QKV_DIM, MS_HIDDEN_DIM

    def heads(x):  # (B, n, H*D) -> (B, H, n, D)
        return x.reshape(B, -1, H, D).transpose(0, 2, 1, 3)

    q = heads(row_emb @ p["wq"])
    k = heads(col_emb @ p["wk"])
    v = heads(col_emb @ p["wv"])

    dp = jnp.einsum("bhrd,bhcd->bhrc", q, k) / (D ** 0.5)            # (B,H,R,C)
    cm = jnp.broadcast_to(cost_mat[:, None, :, :], (B, H, R, C))
    two = jnp.stack([dp, cm], axis=-1).transpose(0, 2, 1, 3, 4)      # (B,R,H,C,2)
    ms1 = jnp.einsum("brhct,htm->brhcm", two, p["mix1_weight"]) \
        + p["mix1_bias"][None, None, :, None, :]
    ms1 = jnp.maximum(ms1, 0.0)
    ms2 = jnp.einsum("brhcm,hmo->brhco", ms1, p["mix2_weight"])[..., 0] \
        + p["mix2_bias"][None, None, :, None, 0]
    mixed = ms2.transpose(0, 2, 1, 3)                                # (B,H,R,C)
    w = jax.nn.softmax(mixed, axis=3)
    out = jnp.einsum("bhrc,bhcd->bhrd", w, v)
    out_concat = out.transpose(0, 2, 1, 3).reshape(B, R, H * D)
    mh = out_concat @ p["wo"] + p["bo"]

    def add_norm(a, b, g, be):
        x = a + b
        mean = jnp.mean(x, axis=1, keepdims=True)
        var = jnp.mean((x - mean) ** 2, axis=1, keepdims=True)
        return (x - mean) / jnp.sqrt(var + EPS) * g + be

    out1 = add_norm(row_emb, mh, p["g1"], p["be1"])
    ff = jnp.maximum(out1 @ p["w1"] + p["b1"], 0.0) @ p["w2"] + p["b2"]
    return add_norm(out1, ff, p["g2"], p["be2"])


# ---------------- deterministic parameter init --------------------------------
def init_params(key):
    E, H, D, M, F = EMBEDDING_DIM, HEAD_NUM, QKV_DIM, MS_HIDDEN_DIM, FF_HIDDEN_DIM
    ks = jax.random.split(key, 16)
    u = lambda k, shape, lim: jax.random.uniform(k, shape, jnp.float32, -lim, lim)
    lin = lambda k, fan_in, shape: u(k, shape, 1.0 / (fan_in ** 0.5))
    return {
        "wq": lin(ks[0], E, (E, H * D)),
        "wk": lin(ks[1], E, (E, H * D)),
        "wv": lin(ks[2], E, (E, H * D)),
        # mixed-score MLP params in PyTorch-native shapes
        "mix1_weight": u(ks[3], (H, 2, M), MIX1_INIT),
        "mix1_bias":   u(ks[4], (H, M), MIX1_INIT),
        "mix2_weight": u(ks[5], (H, M, 1), MIX2_INIT),
        "mix2_bias":   u(ks[6], (H, 1), MIX2_INIT),
        "wo": lin(ks[7], H * D, (H * D, E)),
        "bo": lin(ks[8], H * D, (E,)),
        # InstanceNorm1d affine params (gamma=1, beta=0 at init)
        "g1": jnp.ones((E,), jnp.float32),
        "be1": jnp.zeros((E,), jnp.float32),
        "w1": lin(ks[9], E, (E, F)),
        "b1": lin(ks[10], E, (F,)),
        "w2": lin(ks[11], F, (F, E)),
        "b2": lin(ks[12], F, (E,)),
        "g2": jnp.ones((E,), jnp.float32),
        "be2": jnp.zeros((E,), jnp.float32),
    }


if __name__ == "__main__":
    key = jax.random.PRNGKey(0)
    k_row, k_col, k_cost, k_params = jax.random.split(key, 4)

    row_emb = jax.random.normal(k_row, (BATCH, ROW_CNT, EMBEDDING_DIM), jnp.float32)
    col_emb = jax.random.normal(k_col, (BATCH, COL_CNT, EMBEDDING_DIM), jnp.float32)
    cost_mat = jax.random.uniform(k_cost, (BATCH, ROW_CNT, COL_CNT), jnp.float32)
    params = init_params(k_params)

    out = jax.block_until_ready(encoding_block(row_emb, col_emb, cost_mat, params))
    ref = reference(row_emb, col_emb, cost_mat, params)

    assert out.shape == (BATCH, ROW_CNT, EMBEDDING_DIM)
    assert np.allclose(np.asarray(out), np.asarray(ref), atol=5e-2, rtol=5e-2)

    print("KERNEL_OK")
</pallas_src>

<mosaic_0001>
module attributes {stable_mosaic.version = 11 : i64} {
  func.func @_encoding_block_kernel(%arg0: i32, %arg1: memref<1x8x32xf32, #tpu.memory_space<vmem>>, %arg2: memref<1x12x32xf32, #tpu.memory_space<vmem>>, %arg3: memref<1x8x12xf32, #tpu.memory_space<vmem>>, %arg4: memref<32x32xf32, #tpu.memory_space<vmem>>, %arg5: memref<32x64xf32, #tpu.memory_space<vmem>>, %arg6: memref<4x64xf32, #tpu.memory_space<vmem>>, %arg7: memref<64x4xf32, #tpu.memory_space<vmem>>, %arg8: memref<32x32xf32, #tpu.memory_space<vmem>>, %arg9: memref<32x64xf32, #tpu.memory_space<vmem>>, %arg10: memref<64x32xf32, #tpu.memory_space<vmem>>, %arg11: memref<10x128xf32, #tpu.memory_space<vmem>>, %arg12: memref<1x8x32xf32, #tpu.memory_space<vmem>>) attributes {dimension_semantics = [#tpu.dimension_semantics<parallel>], iteration_bounds = array<i64: 2>, scalar_prefetch = 0 : i64, scratch_operands = 0 : i64, tpu.core_type = #tpu.core_type<tc>, window_params = [{transform_indices = @transform_0, window_bounds = array<i64: 1, 8, 32>}, {transform_indices = @transform_1, window_bounds = array<i64: 1, 12, 32>}, {transform_indices = @transform_2, window_bounds = array<i64: 1, 8, 12>}, {pipeline_mode = #tpu.pipeline_mode<synchronous>, transform_indices = @transform_3, window_bounds = array<i64: 32, 32>}, {pipeline_mode = #tpu.pipeline_mode<synchronous>, transform_indices = @transform_4, window_bounds = array<i64: 32, 64>}, {pipeline_mode = #tpu.pipeline_mode<synchronous>, transform_indices = @transform_5, window_bounds = array<i64: 4, 64>}, {pipeline_mode = #tpu.pipeline_mode<synchronous>, transform_indices = @transform_6, window_bounds = array<i64: 64, 4>}, {pipeline_mode = #tpu.pipeline_mode<synchronous>, transform_indices = @transform_7, window_bounds = array<i64: 32, 32>}, {pipeline_mode = #tpu.pipeline_mode<synchronous>, transform_indices = @transform_8, window_bounds = array<i64: 32, 64>}, {pipeline_mode = #tpu.pipeline_mode<synchronous>, transform_indices = @transform_9, window_bounds = array<i64: 64, 32>}, {pipeline_mode = #tpu.pipeline_mode<synchronous>, transform_indices = @transform_10, window_bounds = array<i64: 10, 128>}, {transform_indices = @transform_11, window_bounds = array<i64: 1, 8, 32>}]} {
    %c0 = arith.constant 0 : index
    %c0_0 = arith.constant 0 : index
    %c0_1 = arith.constant 0 : index
    %0 = vector.load %arg1[%c0, %c0_0, %c0_1] : memref<1x8x32xf32, #tpu.memory_space<vmem>>, vector<1x8x32xf32>
    %1 = vector.shape_cast %0 : vector<1x8x32xf32> to vector<8x32xf32>
    %c0_2 = arith.constant 0 : index
    %c0_3 = arith.constant 0 : index
    %c0_4 = arith.constant 0 : index
    %2 = vector.load %arg2[%c0_2, %c0_3, %c0_4] : memref<1x12x32xf32, #tpu.memory_space<vmem>>, vector<1x12x32xf32>
    %3 = vector.shape_cast %2 : vector<1x12x32xf32> to vector<12x32xf32>
    %c0_5 = arith.constant 0 : index
    %c0_6 = arith.constant 0 : index
    %c0_7 = arith.constant 0 : index
    %4 = vector.load %arg3[%c0_5, %c0_6, %c0_7] : memref<1x8x12xf32, #tpu.memory_space<vmem>>, vector<1x8x12xf32>
    %5 = vector.shape_cast %4 : vector<1x8x12xf32> to vector<8x12xf32>
    %6 = tpu.iota {dimensions = array<i32: 0>} : vector<96x8xi32>
    %7 = tpu.iota {dimensions = array<i32: 1>} : vector<96x8xi32>
    %c12_i32 = arith.constant 12 : i32
    %8 = vector.broadcast %c12_i32 : i32 to vector<96x8xi32>
    %9 = arith.muli %7, %8 : vector<96x8xi32>
    %10 = arith.cmpi sge, %6, %9 : vector<96x8xi32>
    %c12_i32_8 = arith.constant 12 : i32
    %11 = vector.broadcast %c12_i32_8 : i32 to vector<96x8xi32>
    %12 = arith.muli %7, %11 : vector<96x8xi32>
    %c12_i32_9 = arith.constant 12 : i32
    %13 = vector.broadcast %c12_i32_9 : i32 to vector<96x8xi32>
    %14 = arith.addi %12, %13 : vector<96x8xi32>
    %15 = arith.cmpi slt, %6, %14 : vector<96x8xi32>
    %16 = arith.andi %10, %15 : vector<96x8xi1>
    %17 = arith.extui %16 : vector<96x8xi1> to vector<96x8xi32>
    %18 = arith.sitofp %17 : vector<96x8xi32> to vector<96x8xf32>
    %19 = tpu.iota {dimensions = array<i32: 0>} : vector<8x96xi32>
    %20 = tpu.iota {dimensions = array<i32: 1>} : vector<8x96xi32>
    %c12_i32_10 = arith.constant 12 : i32
    %21 = vector.broadcast %c12_i32_10 : i32 to vector<8x96xi32>
    %22 = arith.muli %19, %21 : vector<8x96xi32>
    %23 = arith.cmpi sge, %20, %22 : vector<8x96xi32>
    %c12_i32_11 = arith.constant 12 : i32
    %24 = vector.broadcast %c12_i32_11 : i32 to vector<8x96xi32>
    %25 = arith.muli %19, %24 : vector<8x96xi32>
    %c12_i32_12 = arith.constant 12 : i32
    %26 = vector.broadcast %c12_i32_12 : i32 to vector<8x96xi32>
    %27 = arith.addi %25, %26 : vector<8x96xi32>
    %28 = arith.cmpi slt, %20, %27 : vector<8x96xi32>
    %29 = arith.andi %23, %28 : vector<8x96xi1>
    %30 = arith.extui %29 : vector<8x96xi1> to vector<8x96xi32>
    %31 = arith.sitofp %30 : vector<8x96xi32> to vector<8x96xf32>
    %32 = arith.sitofp %7 : vector<96x8xi32> to vector<96x8xf32>
    %33 = arith.mulf %18, %32 : vector<96x8xf32>
    %cst = arith.constant dense<0.000000e+00> : vector<96xf32>
    %34 = vector.multi_reduction <add>, %33, %cst [1] : vector<96x8xf32> to vector<96xf32>
    %35 = vector.shape_cast %34 : vector<96xf32> to vector<96x1xf32>
    %36 = vector.extract_strided_slice %6 {offsets = [0, 0], sizes = [96, 1], strides = [1, 1]} : vector<96x8xi32> to vector<96x1xi32>
    %37 = arith.sitofp %36 : vector<96x1xi32> to vector<96x1xf32>
    %cst_13 = arith.constant 1.200000e+01 : f32
    %38 = vector.broadcast %cst_13 : f32 to vector<96x1xf32>
    %39 = arith.mulf %38, %35 : vector<96x1xf32>
    %40 = arith.subf %37, %39 : vector<96x1xf32>
    %41 = tpu.iota {dimensions = array<i32: 1>} : vector<96x12xi32>
    %42 = arith.sitofp %41 : vector<96x12xi32> to vector<96x12xf32>
    %43 = vector.broadcast %40 : vector<96x1xf32> to vector<96x12xf32>
    %44 = arith.subf %43, %42 : vector<96x12xf32>
    %45 = math.absf %44 : vector<96x12xf32>
    %cst_14 = arith.constant 5.000000e-01 : f32
    %46 = vector.broadcast %cst_14 : f32 to vector<96x12xf32>
    %47 = arith.cmpf olt, %45, %46 : vector<96x12xf32>
    %48 = arith.extui %47 : vector<96x12xi1> to vector<96x12xi32>
    %49 = arith.sitofp %48 : vector<96x12xi32> to vector<96x12xf32>
    %50 = tpu.iota {dimensions = array<i32: 0>} : vector<32x4xi32>
    %51 = tpu.iota {dimensions = array<i32: 1>} : vector<32x4xi32>
    %c8_i32 = arith.constant 8 : i32
    %52 = vector.broadcast %c8_i32 : i32 to vector<32x4xi32>
    %53 = arith.muli %51, %52 : vector<32x4xi32>
    %54 = arith.cmpi sge, %50, %53 : vector<32x4xi32>
    %c8_i32_15 = arith.constant 8 : i32
    %55 = vector.broadcast %c8_i32_15 : i32 to vector<32x4xi32>
    %56 = arith.muli %51, %55 : vector<32x4xi32>
    %c8_i32_16 = arith.constant 8 : i32
    %57 = vector.broadcast %c8_i32_16 : i32 to vector<32x4xi32>
    %58 = arith.addi %56, %57 : vector<32x4xi32>
    %59 = arith.cmpi slt, %50, %58 : vector<32x4xi32>
    %60 = arith.andi %54, %59 : vector<32x4xi1>
    %61 = arith.extui %60 : vector<32x4xi1> to vector<32x4xi32>
    %62 = arith.sitofp %61 : vector<32x4xi32> to vector<32x4xf32>
    %cst_17 = arith.constant 0.353553385 : f32
    %63 = vector.broadcast %cst_17 : f32 to vector<32x4xf32>
    %64 = arith.mulf %62, %63 : vector<32x4xf32>
    %65 = tpu.iota {dimensions = array<i32: 0>} : vector<4x32xi32>
    %66 = tpu.iota {dimensions = array<i32: 1>} : vector<4x32xi32>
    %c8_i32_18 = arith.constant 8 : i32
    %67 = vector.broadcast %c8_i32_18 : i32 to vector<4x32xi32>
    %68 = arith.muli %65, %67 : vector<4x32xi32>
    %69 = arith.cmpi sge, %66, %68 : vector<4x32xi32>
    %c8_i32_19 = arith.constant 8 : i32
    %70 = vector.broadcast %c8_i32_19 : i32 to vector<4x32xi32>
    %71 = arith.muli %65, %70 : vector<4x32xi32>
    %c8_i32_20 = arith.constant 8 : i32
    %72 = vector.broadcast %c8_i32_20 : i32 to vector<4x32xi32>
    %73 = arith.addi %71, %72 : vector<4x32xi32>
    %74 = arith.cmpi slt, %66, %73 : vector<4x32xi32>
    %75 = arith.andi %69, %74 : vector<4x32xi1>
    %76 = arith.extui %75 : vector<4x32xi1> to vector<4x32xi32>
    %77 = arith.sitofp %76 : vector<4x32xi32> to vector<4x32xf32>
    %c0_21 = arith.constant 0 : index
    %c0_22 = arith.constant 0 : index
    %78 = vector.load %arg4[%c0_21, %c0_22] : memref<32x32xf32, #tpu.memory_space<vmem>>, vector<32x32xf32>
    %cst_23 = arith.constant dense<0.000000e+00> : vector<8x32xf32>
    %79 = tpu.matmul %1, %78, %cst_23 {dimension_numbers = #tpu.dot_dimension_numbers<[1], [0], [0], [1], [0, 0, 1, 1], [], []>} : vector<8x32xf32>, vector<32x32xf32>, vector<8x32xf32> -> vector<8x32xf32>
    %c0_24 = arith.constant 0 : index
    %c0_25 = arith.constant 0 : index
    %80 = vector.load %arg5[%c0_24, %c0_25] : memref<32x64xf32, #tpu.memory_space<vmem>>, vector<32x64xf32>
    %cst_26 = arith.constant dense<0.000000e+00> : vector<12x64xf32>
    %81 = tpu.matmul %3, %80, %cst_26 {dimension_numbers = #tpu.dot_dimension_numbers<[1], [0], [0], [1], [0, 0, 1, 1], [], []>} : vector<12x32xf32>, vector<32x64xf32>, vector<12x64xf32> -> vector<12x64xf32>
    %cst_27 = arith.constant dense<0.000000e+00> : vector<96x32xf32>
    %82 = tpu.matmul %18, %79, %cst_27 {dimension_numbers = #tpu.dot_dimension_numbers<[1], [0], [0], [1], [0, 0, 1, 1], [], []>} : vector<96x8xf32>, vector<8x32xf32>, vector<96x32xf32> -> vector<96x32xf32>
    %cst_28 = arith.constant dense<0.000000e+00> : vector<96x64xf32>
    %83 = tpu.matmul %49, %81, %cst_28 {dimension_numbers = #tpu.dot_dimension_numbers<[1], [0], [0], [1], [0, 0, 1, 1], [], []>} : vector<96x12xf32>, vector<12x64xf32>, vector<96x64xf32> -> vector<96x64xf32>
    %84 = vector.extract_strided_slice %83 {offsets = [0, 0], sizes = [96, 32], strides = [1, 1]} : vector<96x64xf32> to vector<96x32xf32>
    %85 = vector.extract_strided_slice %83 {offsets = [0, 32], sizes = [96, 32], strides = [1, 1]} : vector<96x64xf32> to vector<96x32xf32>
    %cst_29 = arith.constant dense<0.000000e+00> : vector<96x12xf32>
    %86 = tpu.matmul %18, %5, %cst_29 {dimension_numbers = #tpu.dot_dimension_numbers<[1], [0], [0], [1], [0, 0, 1, 1], [], []>} : vector<96x8xf32>, vector<8x12xf32>, vector<96x12xf32> -> vector<96x12xf32>
    %87 = arith.mulf %86, %49 : vector<96x12xf32>
    %cst_30 = arith.constant dense<0.000000e+00> : vector<96xf32>
    %88 = vector.multi_reduction <add>, %87, %cst_30 [1] : vector<96x12xf32> to vector<96xf32>
    %89 = vector.shape_cast %88 : vector<96xf32> to vector<96x1xf32>
    %90 = arith.mulf %82, %84 : vector<96x32xf32>
    %cst_31 = arith.constant dense<0.000000e+00> : vector<96x4xf32>
    %91 = tpu.matmul %90, %64, %cst_31 {dimension_numbers = #tpu.dot_dimension_numbers<[1], [0], [0], [1], [0, 0, 1, 1], [], []>} : vector<96x32xf32>, vector<32x4xf32>, vector<96x4xf32> -> vector<96x4xf32>
    %c9 = arith.constant 9 : index
    %c0_32 = arith.constant 0 : index
    %92 = vector.load %arg11[%c9, %c0_32] : memref<10x128xf32, #tpu.memory_space<vmem>>, vector<1x64xf32>
    %c7 = arith.constant 7 : index
    %c0_33 = arith.constant 0 : index
    %93 = vector.load %arg11[%c7, %c0_33] : memref<10x128xf32, #tpu.memory_space<vmem>>, vector<1x64xf32>
    %c8 = arith.constant 8 : index
    %c0_34 = arith.constant 0 : index
    %94 = vector.load %arg11[%c8, %c0_34] : memref<10x128xf32, #tpu.memory_space<vmem>>, vector<1x4xf32>
    %c0_35 = arith.constant 0 : index
    %c0_36 = arith.constant 0 : index
    %95 = vector.load %arg6[%c0_35, %c0_36] : memref<4x64xf32, #tpu.memory_space<vmem>>, vector<4x64xf32>
    %cst_37 = arith.constant dense<0.000000e+00> : vector<96x64xf32>
    %96 = tpu.matmul %91, %95, %cst_37 {dimension_numbers = #tpu.dot_dimension_numbers<[1], [0], [0], [1], [0, 0, 1, 1], [], []>} : vector<96x4xf32>, vector<4x64xf32>, vector<96x64xf32> -> vector<96x64xf32>
    %97 = vector.broadcast %89 : vector<96x1xf32> to vector<96x64xf32>
    %98 = vector.broadcast %92 : vector<1x64xf32> to vector<96x64xf32>
    %99 = arith.mulf %97, %98 : vector<96x64xf32>
    %100 = arith.addf %96, %99 : vector<96x64xf32>
    %101 = vector.broadcast %93 : vector<1x64xf32> to vector<96x64xf32>
    %102 = arith.addf %100, %101 : vector<96x64xf32>
    %cst_38 = arith.constant 0.000000e+00 : f32
    %103 = vector.broadcast %cst_38 : f32 to vector<96x64xf32>
    %104 = arith.maximumf %102, %103 : vector<96x64xf32>
    %c0_39 = arith.constant 0 : index
    %c0_40 = arith.constant 0 : index
    %105 = vector.load %arg7[%c0_39, %c0_40] : memref<64x4xf32, #tpu.memory_space<vmem>>, vector<64x4xf32>
    %cst_41 = arith.constant dense<0.000000e+00> : vector<96x4xf32>
    %106 = tpu.matmul %104, %105, %cst_41 {dimension_numbers = #tpu.dot_dimension_numbers<[1], [0], [0], [1], [0, 0, 1, 1], [], []>} : vector<96x64xf32>, vector<64x4xf32>, vector<96x4xf32> -> vector<96x4xf32>
    %107 = vector.broadcast %94 : vector<1x4xf32> to vector<96x4xf32>
    %108 = arith.addf %106, %107 : vector<96x4xf32>
    %cst_42 = arith.constant dense<0xFF800000> : vector<4xf32>
    %109 = vector.multi_reduction <maximumf>, %108, %cst_42 [0] : vector<96x4xf32> to vector<4xf32>
    %110 = vector.shape_cast %109 : vector<4xf32> to vector<1x4xf32>
    %111 = vector.broadcast %110 : vector<1x4xf32> to vector<96x4xf32>
    %112 = arith.subf %108, %111 : vector<96x4xf32>
    %113 = math.exp %112 : vector<96x4xf32>
    %cst_43 = arith.constant dense<0.000000e+00> : vector<8x4xf32>
    %114 = tpu.matmul %31, %113, %cst_43 {dimension_numbers = #tpu.dot_dimension_numbers<[1], [0], [0], [1], [0, 0, 1, 1], [], []>} : vector<8x96xf32>, vector<96x4xf32>, vector<8x4xf32> -> vector<8x4xf32>
    %cst_44 = arith.constant dense<0.000000e+00> : vector<96x4xf32>
    %115 = tpu.matmul %18, %114, %cst_44 {dimension_numbers = #tpu.dot_dimension_numbers<[1], [0], [0], [1], [0, 0, 1, 1], [], []>} : vector<96x8xf32>, vector<8x4xf32>, vector<96x4xf32> -> vector<96x4xf32>
    %116 = tpu.reciprocal %115 {approx = true} : vector<96x4xf32> -> vector<96x4xf32>
    %117 = arith.mulf %113, %116 : vector<96x4xf32>
    %cst_45 = arith.constant dense<0.000000e+00> : vector<96x32xf32>
    %118 = tpu.matmul %117, %77, %cst_45 {dimension_numbers = #tpu.dot_dimension_numbers<[1], [0], [0], [1], [0, 0, 1, 1], [], []>} : vector<96x4xf32>, vector<4x32xf32>, vector<96x32xf32> -> vector<96x32xf32>
    %119 = arith.mulf %118, %85 : vector<96x32xf32>
    %cst_46 = arith.constant dense<0.000000e+00> : vector<8x32xf32>
    %120 = tpu.matmul %31, %119, %cst_46 {dimension_numbers = #tpu.dot_dimension_numbers<[1], [0], [0], [1], [0, 0, 1, 1], [], []>} : vector<8x96xf32>, vector<96x32xf32>, vector<8x32xf32> -> vector<8x32xf32>
    %c0_47 = arith.constant 0 : index
    %c0_48 = arith.constant 0 : index
    %121 = vector.load %arg11[%c0_47, %c0_48] : memref<10x128xf32, #tpu.memory_space<vmem>>, vector<1x32xf32>
    %c0_49 = arith.constant 0 : index
    %c0_50 = arith.constant 0 : index
    %122 = vector.load %arg8[%c0_49, %c0_50] : memref<32x32xf32, #tpu.memory_space<vmem>>, vector<32x32xf32>
    %cst_51 = arith.constant dense<0.000000e+00> : vector<8x32xf32>
    %123 = tpu.matmul %120, %122, %cst_51 {dimension_numbers = #tpu.dot_dimension_numbers<[1], [0], [0], [1], [0, 0, 1, 1], [], []>} : vector<8x32xf32>, vector<32x32xf32>, vector<8x32xf32> -> vector<8x32xf32>
    %124 = vector.broadcast %121 : vector<1x32xf32> to vector<8x32xf32>
    %125 = arith.addf %123, %124 : vector<8x32xf32>
    %126 = arith.addf %1, %125 : vector<8x32xf32>
    %c1 = arith.constant 1 : index
    %c0_52 = arith.constant 0 : index
    %127 = vector.load %arg11[%c1, %c0_52] : memref<10x128xf32, #tpu.memory_space<vmem>>, vector<1x32xf32>
    %c2 = arith.constant 2 : index
    %c0_53 = arith.constant 0 : index
    %128 = vector.load %arg11[%c2, %c0_53] : memref<10x128xf32, #tpu.memory_space<vmem>>, vector<1x32xf32>
    %cst_54 = arith.constant dense<0.000000e+00> : vector<32xf32>
    %129 = vector.multi_reduction <add>, %126, %cst_54 [0] : vector<8x32xf32> to vector<32xf32>
    %130 = vector.shape_cast %129 : vector<32xf32> to vector<1x32xf32>
    %cst_55 = arith.constant 8.000000e+00 : f32
    %131 = vector.broadcast %cst_55 : f32 to vector<1x32xf32>
    %132 = arith.divf %130, %131 : vector<1x32xf32>
    %133 = vector.broadcast %132 : vector<1x32xf32> to vector<8x32xf32>
    %134 = arith.subf %126, %133 : vector<8x32xf32>
    %135 = arith.mulf %134, %134 : vector<8x32xf32>
    %cst_56 = arith.constant dense<0.000000e+00> : vector<32xf32>
    %136 = vector.multi_reduction <add>, %135, %cst_56 [0] : vector<8x32xf32> to vector<32xf32>
    %137 = vector.shape_cast %136 : vector<32xf32> to vector<1x32xf32>
    %cst_57 = arith.constant 8.000000e+00 : f32
    %138 = vector.broadcast %cst_57 : f32 to vector<1x32xf32>
    %139 = arith.divf %137, %138 : vector<1x32xf32>
    %140 = vector.broadcast %132 : vector<1x32xf32> to vector<8x32xf32>
    %141 = arith.subf %126, %140 : vector<8x32xf32>
    %cst_58 = arith.constant 9.99999974E-6 : f32
    %142 = vector.broadcast %cst_58 : f32 to vector<1x32xf32>
    %143 = arith.addf %139, %142 : vector<1x32xf32>
    %144 = math.rsqrt %143 : vector<1x32xf32>
    %145 = vector.broadcast %144 : vector<1x32xf32> to vector<8x32xf32>
    %146 = arith.mulf %141, %145 : vector<8x32xf32>
    %147 = vector.broadcast %127 : vector<1x32xf32> to vector<8x32xf32>
    %148 = arith.mulf %146, %147 : vector<8x32xf32>
    %149 = vector.broadcast %128 : vector<1x32xf32> to vector<8x32xf32>
    %150 = arith.addf %148, %149 : vector<8x32xf32>
    %c0_59 = arith.constant 0 : index
    %c0_60 = arith.constant 0 : index
    %151 = vector.load %arg9[%c0_59, %c0_60] : memref<32x64xf32, #tpu.memory_space<vmem>>, vector<32x64xf32>
    %cst_61 = arith.constant dense<0.000000e+00> : vector<8x64xf32>
    %152 = tpu.matmul %150, %151, %cst_61 {dimension_numbers = #tpu.dot_dimension_numbers<[1], [0], [0], [1], [0, 0, 1, 1], [], []>} : vector<8x32xf32>, vector<32x64xf32>, vector<8x64xf32> -> vector<8x64xf32>
    %c3 = arith.constant 3 : index
    %c0_62 = arith.constant 0 : index
    %153 = vector.load %arg11[%c3, %c0_62] : memref<10x128xf32, #tpu.memory_space<vmem>>, vector<1x64xf32>
    %154 = vector.broadcast %153 : vector<1x64xf32> to vector<8x64xf32>
    %155 = arith.addf %152, %154 : vector<8x64xf32>
    %cst_63 = arith.constant 0.000000e+00 : f32
    %156 = vector.broadcast %cst_63 : f32 to vector<8x64xf32>
    %157 = arith.maximumf %155, %156 : vector<8x64xf32>
    %c0_64 = arith.constant 0 : index
    %c0_65 = arith.constant 0 : index
    %158 = vector.load %arg10[%c0_64, %c0_65] : memref<64x32xf32, #tpu.memory_space<vmem>>, vector<64x32xf32>
    %cst_66 = arith.constant dense<0.000000e+00> : vector<8x32xf32>
    %159 = tpu.matmul %157, %158, %cst_66 {dimension_numbers = #tpu.dot_dimension_numbers<[1], [0], [0], [1], [0, 0, 1, 1], [], []>} : vector<8x64xf32>, vector<64x32xf32>, vector<8x32xf32> -> vector<8x32xf32>
    %c4 = arith.constant 4 : index
    %c0_67 = arith.constant 0 : index
    %160 = vector.load %arg11[%c4, %c0_67] : memref<10x128xf32, #tpu.memory_space<vmem>>, vector<1x32xf32>
    %161 = vector.broadcast %160 : vector<1x32xf32> to vector<8x32xf32>
    %162 = arith.addf %159, %161 : vector<8x32xf32>
    %163 = arith.addf %150, %162 : vector<8x32xf32>
    %c5 = arith.constant 5 : index
    %c0_68 = arith.constant 0 : index
    %164 = vector.load %arg11[%c5, %c0_68] : memref<10x128xf32, #tpu.memory_space<vmem>>, vector<1x32xf32>
    %c6 = arith.constant 6 : index
    %c0_69 = arith.constant 0 : index
    %165 = vector.load %arg11[%c6, %c0_69] : memref<10x128xf32, #tpu.memory_space<vmem>>, vector<1x32xf32>
    %cst_70 = arith.constant dense<0.000000e+00> : vector<32xf32>
    %166 = vector.multi_reduction <add>, %163, %cst_70 [0] : vector<8x32xf32> to vector<32xf32>
    %167 = vector.shape_cast %166 : vector<32xf32> to vector<1x32xf32>
    %cst_71 = arith.constant 8.000000e+00 : f32
    %168 = vector.broadcast %cst_71 : f32 to vector<1x32xf32>
    %169 = arith.divf %167, %168 : vector<1x32xf32>
    %170 = vector.broadcast %169 : vector<1x32xf32> to vector<8x32xf32>
    %171 = arith.subf %163, %170 : vector<8x32xf32>
    %172 = arith.mulf %171, %171 : vector<8x32xf32>
    %cst_72 = arith.constant dense<0.000000e+00> : vector<32xf32>
    %173 = vector.multi_reduction <add>, %172, %cst_72 [0] : vector<8x32xf32> to vector<32xf32>
    %174 = vector.shape_cast %173 : vector<32xf32> to vector<1x32xf32>
    %cst_73 = arith.constant 8.000000e+00 : f32
    %175 = vector.broadcast %cst_73 : f32 to vector<1x32xf32>
    %176 = arith.divf %174, %175 : vector<1x32xf32>
    %177 = vector.broadcast %169 : vector<1x32xf32> to vector<8x32xf32>
    %178 = arith.subf %163, %177 : vector<8x32xf32>
    %cst_74 = arith.constant 9.99999974E-6 : f32
    %179 = vector.broadcast %cst_74 : f32 to vector<1x32xf32>
    %180 = arith.addf %176, %179 : vector<1x32xf32>
    %181 = math.rsqrt %180 : vector<1x32xf32>
    %182 = vector.broadcast %181 : vector<1x32xf32> to vector<8x32xf32>
    %183 = arith.mulf %178, %182 : vector<8x32xf32>
    %184 = vector.broadcast %164 : vector<1x32xf32> to vector<8x32xf32>
    %185 = arith.mulf %183, %184 : vector<8x32xf32>
    %186 = vector.broadcast %165 : vector<1x32xf32> to vector<8x32xf32>
    %187 = arith.addf %185, %186 : vector<8x32xf32>
    %c0_75 = arith.constant 0 : index
    %c0_76 = arith.constant 0 : index
    %c0_77 = arith.constant 0 : index
    %188 = vector.load %arg12[%c0_75, %c0_76, %c0_77] : memref<1x8x32xf32, #tpu.memory_space<vmem>>, vector<1x8x32xf32>
    %189 = vector.shape_cast %188 : vector<1x8x32xf32> to vector<8x32xf32>
    %190 = vector.shape_cast %187 : vector<8x32xf32> to vector<1x8x32xf32>
    tpu.vector_store %arg12[%c0_75, %c0_76, %c0_77], %190 {strides = array<i32>} : memref<1x8x32xf32, #tpu.memory_space<vmem>>, vector<1x8x32xf32>,
    return
  }
  func.func @transform_0(%arg0: i32) -> (i32, i32, i32) {
    %c0_i32 = arith.constant 0 : i32
    %c0_i32_0 = arith.constant 0 : i32
    %c0_i32_1 = arith.constant 0 : i32
    return %arg0, %c0_i32, %c0_i32_0 : i32, i32, i32
  }
  func.func @transform_1(%arg0: i32) -> (i32, i32, i32) {
    %c0_i32 = arith.constant 0 : i32
    %c0_i32_0 = arith.constant 0 : i32
    %c0_i32_1 = arith.constant 0 : i32
    return %arg0, %c0_i32, %c0_i32_0 : i32, i32, i32
  }
  func.func @transform_2(%arg0: i32) -> (i32, i32, i32) {
    %c0_i32 = arith.constant 0 : i32
    %c0_i32_0 = arith.constant 0 : i32
    %c0_i32_1 = arith.constant 0 : i32
    return %arg0, %c0_i32, %c0_i32_0 : i32, i32, i32
  }
  func.func @transform_3(%arg0: i32) -> (i32, i32) {
    %c0_i32 = arith.constant 0 : i32
    %c0_i32_0 = arith.constant 0 : i32
    %c0_i32_1 = arith.constant 0 : i32
    return %c0_i32, %c0_i32_0 : i32, i32
  }
  func.func @transform_4(%arg0: i32) -> (i32, i32) {
    %c0_i32 = arith.constant 0 : i32
    %c0_i32_0 = arith.constant 0 : i32
    %c0_i32_1 = arith.constant 0 : i32
    return %c0_i32, %c0_i32_0 : i32, i32
  }
  func.func @transform_5(%arg0: i32) -> (i32, i32) {
    %c0_i32 = arith.constant 0 : i32
    %c0_i32_0 = arith.constant 0 : i32
    %c0_i32_1 = arith.constant 0 : i32
    return %c0_i32, %c0_i32_0 : i32, i32
  }
  func.func @transform_6(%arg0: i32) -> (i32, i32) {
    %c0_i32 = arith.constant 0 : i32
    %c0_i32_0 = arith.constant 0 : i32
    %c0_i32_1 = arith.constant 0 : i32
    return %c0_i32, %c0_i32_0 : i32, i32
  }
  func.func @transform_7(%arg0: i32) -> (i32, i32) {
    %c0_i32 = arith.constant 0 : i32
    %c0_i32_0 = arith.constant 0 : i32
    %c0_i32_1 = arith.constant 0 : i32
    return %c0_i32, %c0_i32_0 : i32, i32
  }
  func.func @transform_8(%arg0: i32) -> (i32, i32) {
    %c0_i32 = arith.constant 0 : i32
    %c0_i32_0 = arith.constant 0 : i32
    %c0_i32_1 = arith.constant 0 : i32
    return %c0_i32, %c0_i32_0 : i32, i32
  }
  func.func @transform_9(%arg0: i32) -> (i32, i32) {
    %c0_i32 = arith.constant 0 : i32
    %c0_i32_0 = arith.constant 0 : i32
    %c0_i32_1 = arith.constant 0 : i32
    return %c0_i32, %c0_i32_0 : i32, i32
  }
  func.func @transform_10(%arg0: i32) -> (i32, i32) {
    %c0_i32 = arith.constant 0 : i32
    %c0_i32_0 = arith.constant 0 : i32
    %c0_i32_1 = arith.constant 0 : i32
    return %c0_i32, %c0_i32_0 : i32, i32
  }
  func.func @transform_11(%arg0: i32) -> (i32, i32, i32) {
    %c0_i32 = arith.constant 0 : i32
    %c0_i32_0 = arith.constant 0 : i32
    %c0_i32_1 = arith.constant 0 : i32
    return %arg0, %c0_i32, %c0_i32_0 : i32, i32, i32
  }
}

</mosaic_0001>

<llo_original>
// kernel: encoding_block.1
$region0: #{encoding_block.1}
  #allocation0 [shape = 'u32[]', space=smem, size = 0x4, offset = 0x4, fixed_abs, tag = 'smem constant byte address 0x4 - core index']
  #allocation1 [shape = 'u32[72,128]{1,0:T(1,128)}', space=vmem, size = 0x9000, scoped, tag = 'internal scratch']
  %s0 = inlined_call_operand.vmem [shape: f32[2,8,32], index: 0, kind: input, shape index: {}]
  %s1 = inlined_call_operand.vmem [shape: f32[2,12,32], index: 1, kind: input, shape index: {}]
  %s2 = inlined_call_operand.vmem [shape: f32[2,8,12], index: 2, kind: input, shape index: {}]
  %s3 = inlined_call_operand.vmem [shape: f32[32,32], index: 3, kind: input, shape index: {}]
  %s4 = inlined_call_operand.vmem [shape: f32[32,64], index: 4, kind: input, shape index: {}]
  %s5 = inlined_call_operand.vmem [shape: f32[4,64], index: 5, kind: input, shape index: {}]
  %s6 = inlined_call_operand.vmem [shape: f32[64,4], index: 6, kind: input, shape index: {}]
  %s7 = inlined_call_operand.vmem [shape: f32[32,32], index: 7, kind: input, shape index: {}]
  %s8 = inlined_call_operand.vmem [shape: f32[32,64], index: 8, kind: input, shape index: {}]
  %s9 = inlined_call_operand.vmem [shape: f32[64,32], index: 9, kind: input, shape index: {}]
  %s10 = inlined_call_operand.vmem [shape: f32[10,128], index: 10, kind: input, shape index: {}]
  %s11 = inlined_call_operand.hbm [shape: f32[2,8,32], index: 11, kind: output, shape index: {}]
  %s12 = sld [smem:[#allocation0]]
  $region77: #{encoding_block.1} parent=0
    _
  %s14 = ssub.s32 1, %s12
  %s15 = scalar_select 0, %s14, %s12
  $region1: #{encoding_block.1} parent=0
    #allocation2 [shape = 'u8[8192]{0}', space=vmem, size = 0x2000, scoped, tag = 'output window, operand 0']
    #allocation3 [shape = 's32[2]{0}', space=sflag, size = 0x8, scoped, tag = 'scoped memory for encoding_block.1']
    %16 = vsyncpa [#allocation3], 0
    %s17 = scalar_lea.sflag [#allocation3], 1
    %18 = vsyncpa %s17, 0
    loop: start=0, step=1, limit=4
    $region2: #{encoding_block.1} parent=1 // loop_pre_header
      _
    $region3: #{encoding_block.1} parent=1 // loop_header
      %s20 = sphi 0, %s24
      %p21 = scmp.ge.s32.totalorder %s20, 4
      %s30 = sphi 0, %s32
      %s33 = sphi 0, %s30
      %s34 = sphi 0, %s33
      %s50 = sphi 0, %s34
      %s56 = sphi 0, %s58
      %s59 = sphi 0, %s56
      %s60 = sphi 0, %s59
      %s76 = sphi 0, %s60
      %s82 = sphi 0, %s84
      %s85 = sphi 0, %s82
      %s86 = sphi 0, %s85
      %s102 = sphi 0, %s86
      %s106 = sphi 0, %s106
      %s108 = sphi 0, %s106
      %s109 = sphi 0, %s108
      %s123 = sphi 0, %s109
      %s127 = sphi 0, %s127
      %s129 = sphi 0, %s127
      %s130 = sphi 0, %s129
      %s144 = sphi 0, %s130
      %s148 = sphi 0, %s148
      %s150 = sphi 0, %s148
      %s151 = sphi 0, %s150
      %s165 = sphi 0, %s151
      %s169 = sphi 0, %s169
      %s171 = sphi 0, %s169
      %s172 = sphi 0, %s171
      %s186 = sphi 0, %s172
      %s190 = sphi 0, %s190
      %s192 = sphi 0, %s190
      %s193 = sphi 0, %s192
      %s207 = sphi 0, %s193
      %s211 = sphi 0, %s211
      %s213 = sphi 0, %s211
      %s214 = sphi 0, %s213
      %s228 = sphi 0, %s214
      %s232 = sphi 0, %s232
      %s234 = sphi 0, %s232
      %s235 = sphi 0, %s234
      %s249 = sphi 0, %s235
      %s253 = sphi 0, %s253
      %s255 = sphi 0, %s253
      %s256 = sphi 0, %s255
      %s270 = sphi 0, %s256
      %s276 = sphi 0, %s278
      %s279 = sphi 0, %s276
      %s280 = sphi 0, %s279
      %s296 = sphi 0, %s280
    $region4: #{encoding_block.1} parent=1 // loop_header_branch
      %23 = sbr.rel (%p21) target = $region8
    $region5: #{encoding_block.1} parent=1 // loop_body
      %s25 = ssub.s32 %s20, 1
      %s26 = ssub.s32 %s20, 2
      %s27 = sadd.s32 %s20, 1
      %s28 = ssub.s32 %s20, %s27
      %p29 = scmp.eq.s32.totalorder %s28, 0
      %s31 = sadd.s32 %s30, 1
      %s32 = scalar_select %p29, %s30, %s31
      %p35 = pneg %p29
      %p36 = scmp.eq.s32.totalorder %s20, 1
      %p37 = por %p35, %p36
      %p38 = scmp.ne.s32.totalorder %s30, %s33
      %p39 = scmp.eq.s32.totalorder %s20, 0
      %p40 = por %p38, %p39
      %p41 = scmp.ne.s32.totalorder %s30, %s33
      %p42 = scmp.eq.s32.totalorder %s25, 1
      %p43 = por %p41, %p42
      %p44 = scmp.ne.s32.totalorder %s33, %s34
      %p45 = scmp.eq.s32.totalorder %s25, 0
      %p46 = por %p44, %p45
      %p47 = scmp.ne.s32.totalorder %s33, %s34
      %p48 = scmp.eq.s32.totalorder %s26, 1
      %p49 = por %p47, %p48
      %p51 = scmp.ne.s32.totalorder %s34, %s50
      %p52 = scmp.eq.s32.totalorder %s26, 0
      %p53 = por %p51, %p52
      %s54 = ssub.s32 %s20, %s27
      %p55 = scmp.eq.s32.totalorder %s54, 0
      %s57 = sadd.s32 %s56, 1
      %s58 = scalar_select %p55, %s56, %s57
      %p61 = pneg %p55
      %p62 = scmp.eq.s32.totalorder %s20, 1
      %p63 = por %p61, %p62
      %p64 = scmp.ne.s32.totalorder %s56, %s59
      %p65 = scmp.eq.s32.totalorder %s20, 0
      %p66 = por %p64, %p65
      %p67 = scmp.ne.s32.totalorder %s56, %s59
      %p68 = scmp.eq.s32.totalorder %s25, 1
      %p69 = por %p67, %p68
      %p70 = scmp.ne.s32.totalorder %s59, %s60
      %p71 = scmp.eq.s32.totalorder %s25, 0
      %p72 = por %p70, %p71
      %p73 = scmp.ne.s32.totalorder %s59, %s60
      %p74 = scmp.eq.s32.totalorder %s26, 1
      %p75 = por %p73, %p74
      %p77 = scmp.ne.s32.totalorder %s60, %s76
      %p78 = scmp.eq.s32.totalorder %s26, 0
      %p79 = por %p77, %p78
      %s80 = ssub.s32 %s20, %s27
      %p81 = scmp.eq.s32.totalorder %s80, 0
      %s83 = sadd.s32 %s82, 1
      %s84 = scalar_select %p81, %s82, %s83
      %p87 = pneg %p81
      %p88 = scmp.eq.s32.totalorder %s20, 1
      %p89 = por %p87, %p88
      %p90 = scmp.ne.s32.totalorder %s82, %s85
      %p91 = scmp.eq.s32.totalorder %s20, 0
      %p92 = por %p90, %p91
      %p93 = scmp.ne.s32.totalorder %s82, %s85
      %p94 = scmp.eq.s32.totalorder %s25, 1
      %p95 = por %p93, %p94
      %p96 = scmp.ne.s32.totalorder %s85, %s86
      %p97 = scmp.eq.s32.totalorder %s25, 0
      %p98 = por %p96, %p97
      %p99 = scmp.ne.s32.totalorder %s85, %s86
      %p100 = scmp.eq.s32.totalorder %s26, 1
      %p101 = por %p99, %p100
      %p103 = scmp.ne.s32.totalorder %s86, %s102
      %p104 = scmp.eq.s32.totalorder %s26, 0
      %p105 = por %p103, %p104
      %s107 = sadd.s32 %s106, 1
      %p110 = scmp.eq.s32.totalorder %s20, 1
      %p111 = scmp.ne.s32.totalorder %s106, %s108
      %p112 = scmp.eq.s32.totalorder %s20, 0
      %p113 = por %p111, %p112
      %p114 = scmp.ne.s32.totalorder %s106, %s108
      %p115 = scmp.eq.s32.totalorder %s25, 1
      %p116 = por %p114, %p115
      %p117 = scmp.ne.s32.totalorder %s108, %s109
      %p118 = scmp.eq.s32.totalorder %s25, 0
      %p119 = por %p117, %p118
      %p120 = scmp.ne.s32.totalorder %s108, %s109
      %p121 = scmp.eq.s32.totalorder %s26, 1
      %p122 = por %p120, %p121
      %p124 = scmp.ne.s32.totalorder %s109, %s123
      %p125 = scmp.eq.s32.totalorder %s26, 0
      %p126 = por %p124, %p125
      %s128 = sadd.s32 %s127, 1
      %p131 = scmp.eq.s32.totalorder %s20, 1
      %p132 = scmp.ne.s32.totalorder %s127, %s129
      %p133 = scmp.eq.s32.totalorder %s20, 0
      %p134 = por %p132, %p133
      %p135 = scmp.ne.s32.totalorder %s127, %s129
      %p136 = scmp.eq.s32.totalorder %s25, 1
      %p137 = por %p135, %p136
      %p138 = scmp.ne.s32.totalorder %s129, %s130
      %p139 = scmp.eq.s32.totalorder %s25, 0
      %p140 = por %p138, %p139
      %p141 = scmp.ne.s32.totalorder %s129, %s130
      %p142 = scmp.eq.s32.totalorder %s26, 1
      %p143 = por %p141, %p142
      %p145 = scmp.ne.s32.totalorder %s130, %s144
      %p146 = scmp.eq.s32.totalorder %s26, 0
      %p147 = por %p145, %p146
      %s149 = sadd.s32 %s148, 1
      %p152 = scmp.eq.s32.totalorder %s20, 1
      %p153 = scmp.ne.s32.totalorder %s148, %s150
      %p154 = scmp.eq.s32.totalorder %s20, 0
      %p155 = por %p153, %p154
      %p156 = scmp.ne.s32.totalorder %s148, %s150
      %p157 = scmp.eq.s32.totalorder %s25, 1
      %p158 = por %p156, %p157
      %p159 = scmp.ne.s32.totalorder %s150, %s151
      %p160 = scmp.eq.s32.totalorder %s25, 0
      %p161 = por %p159, %p160
      %p162 = scmp.ne.s32.totalorder %s150, %s151
      %p163 = scmp.eq.s32.totalorder %s26, 1
      %p164 = por %p162, %p163
      %p166 = scmp.ne.s32.totalorder %s151, %s165
      %p167 = scmp.eq.s32.totalorder %s26, 0
      %p168 = por %p166, %p167
      %s170 = sadd.s32 %s169, 1
      %p173 = scmp.eq.s32.totalorder %s20, 1
      %p174 = scmp.ne.s32.totalorder %s169, %s171
      %p175 = scmp.eq.s32.totalorder %s20, 0
      %p176 = por %p174, %p175
      %p177 = scmp.ne.s32.totalorder %s169, %s171
      %p178 = scmp.eq.s32.totalorder %s25, 1
      %p179 = por %p177, %p178
      %p180 = scmp.ne.s32.totalorder %s171, %s172
      %p181 = scmp.eq.s32.totalorder %s25, 0
      %p182 = por %p180, %p181
      %p183 = scmp.ne.s32.totalorder %s171, %s172
      %p184 = scmp.eq.s32.totalorder %s26, 1
      %p185 = por %p183, %p184
      %p187 = scmp.ne.s32.totalorder %s172, %s186
      %p188 = scmp.eq.s32.totalorder %s26, 0
      %p189 = por %p187, %p188
      %s191 = sadd.s32 %s190, 1
      %p194 = scmp.eq.s32.totalorder %s20, 1
      %p195 = scmp.ne.s32.totalorder %s190, %s192
      %p196 = scmp.eq.s32.totalorder %s20, 0
      %p197 = por %p195, %p196
      %p198 = scmp.ne.s32.totalorder %s190, %s192
      %p199 = scmp.eq.s32.totalorder %s25, 1
      %p200 = por %p198, %p199
      %p201 = scmp.ne.s32.totalorder %s192, %s193
      %p202 = scmp.eq.s32.totalorder %s25, 0
      %p203 = por %p201, %p202
      %p204 = scmp.ne.s32.totalorder %s192, %s193
      %p205 = scmp.eq.s32.totalorder %s26, 1
      %p206 = por %p204, %p205
      %p208 = scmp.ne.s32.totalorder %s193, %s207
      %p209 = scmp.eq.s32.totalorder %s26, 0
      %p210 = por %p208, %p209
      %s212 = sadd.s32 %s211, 1
      %p215 = scmp.eq.s32.totalorder %s20, 1
      %p216 = scmp.ne.s32.totalorder %s211, %s213
      %p217 = scmp.eq.s32.totalorder %s20, 0
      %p218 = por %p216, %p217
      %p219 = scmp.ne.s32.totalorder %s211, %s213
      %p220 = scmp.eq.s32.totalorder %s25, 1
      %p221 = por %p219, %p220
      %p222 = scmp.ne.s32.totalorder %s213, %s214
      %p223 = scmp.eq.s32.totalorder %s25, 0
      %p224 = por %p222, %p223
      %p225 = scmp.ne.s32.totalorder %s213, %s214
      %p226 = scmp.eq.s32.totalorder %s26, 1
      %p227 = por %p225, %p226
      %p229 = scmp.ne.s32.totalorder %s214, %s228
      %p230 = scmp.eq.s32.totalorder %s26, 0
      %p231 = por %p229, %p230
      %s233 = sadd.s32 %s232, 1
      %p236 = scmp.eq.s32.totalorder %s20, 1
      %p237 = scmp.ne.s32.totalorder %s232, %s234
      %p238 = scmp.eq.s32.totalorder %s20, 0
      %p239 = por %p237, %p238
      %p240 = scmp.ne.s32.totalorder %s232, %s234
      %p241 = scmp.eq.s32.totalorder %s25, 1
      %p242 = por %p240, %p241
      %p243 = scmp.ne.s32.totalorder %s234, %s235
      %p244 = scmp.eq.s32.totalorder %s25, 0
      %p245 = por %p243, %p244
      %p246 = scmp.ne.s32.totalorder %s234, %s235
      %p247 = scmp.eq.s32.totalorder %s26, 1
      %p248 = por %p246, %p247
      %p250 = scmp.ne.s32.totalorder %s235, %s249
      %p251 = scmp.eq.s32.totalorder %s26, 0
      %p252 = por %p250, %p251
      %s254 = sadd.s32 %s253, 1
      %p257 = scmp.eq.s32.totalorder %s20, 1
      %p258 = scmp.ne.s32.totalorder %s253, %s255
      %p259 = scmp.eq.s32.totalorder %s20, 0
      %p260 = por %p258, %p259
      %p261 = scmp.ne.s32.totalorder %s253, %s255
      %p262 = scmp.eq.s32.totalorder %s25, 1
      %p263 = por %p261, %p262
      %p264 = scmp.ne.s32.totalorder %s255, %s256
      %p265 = scmp.eq.s32.totalorder %s25, 0
      %p266 = por %p264, %p265
      %p267 = scmp.ne.s32.totalorder %s255, %s256
      %p268 = scmp.eq.s32.totalorder %s26, 1
      %p269 = por %p267, %p268
      %p271 = scmp.ne.s32.totalorder %s256, %s270
      %p272 = scmp.eq.s32.totalorder %s26, 0
      %p273 = por %p271, %p272
      %s274 = ssub.s32 %s20, %s27
      %p275 = scmp.eq.s32.totalorder %s274, 0
      %s277 = sadd.s32 %s276, 1
      %s278 = scalar_select %p275, %s276, %s277
      %p281 = pneg %p275
      %p282 = scmp.eq.s32.totalorder %s20, 1
      %p283 = por %p281, %p282
      %p284 = scmp.ne.s32.totalorder %s276, %s279
      %p285 = scmp.eq.s32.totalorder %s20, 0
      %p286 = por %p284, %p285
      %p287 = scmp.ne.s32.totalorder %s276, %s279
      %p288 = scmp.eq.s32.totalorder %s25, 1
      %p289 = por %p287, %p288
      %p290 = scmp.ne.s32.totalorder %s279, %s280
      %p291 = scmp.eq.s32.totalorder %s25, 0
      %p292 = por %p290, %p291
      %p293 = scmp.ne.s32.totalorder %s279, %s280
      %p294 = scmp.eq.s32.totalorder %s26, 1
      %p295 = por %p293, %p294
      %p297 = scmp.ne.s32.totalorder %s280, %s296
      %p298 = scmp.eq.s32.totalorder %s26, 0
      %p299 = por %p297, %p298
      %p300 = scmp.le.s32.totalorder 1, %s20
      %p301 = scmp.lt.s32.totalorder %s20, 3
      %p302 = pnand %p300, %p301
      %p303 = pneg %p302
      // Predicated region
      $region9: #{encoding_block.1} parent=5 // pred_check
        _
      $region10: #{encoding_block.1} parent=5 // pred_check_branch
        %305 = sbr.rel (%p302) target = $region12
      $region11: #{encoding_block.1} parent=5 // pred_region
        %s306 = ssub.s32 %s20, 1
        // Predicated region
        $region13: #{encoding_block.1} parent=11 // pred_check
          %p307 = pneg %p119
        $region14: #{encoding_block.1} parent=11 // pred_check_branch
          %309 = sbr.rel (%p307) target = $region16
        $region15: #{encoding_block.1} parent=11 // pred_region
          _
        $region16: #{encoding_block.1} parent=11 // pred_fallthru
          _
        // Predicated region
        $region17: #{encoding_block.1} parent=11 // pred_check
          %p310 = pneg %p140
        $region18: #{encoding_block.1} parent=11 // pred_check_branch
          %312 = sbr.rel (%p310) target = $region20
        $region19: #{encoding_block.1} parent=11 // pred_region
          _
        $region20: #{encoding_block.1} parent=11 // pred_fallthru
          _
        // Predicated region
        $region21: #{encoding_block.1} parent=11 // pred_check
          %p313 = pneg %p161
        $region22: #{encoding_block.1} parent=11 // pred_check_branch
          %315 = sbr.rel (%p313) target = $region24
        $region23: #{encoding_block.1} parent=11 // pred_region
          _
        $region24: #{encoding_block.1} parent=11 // pred_fallthru
          _
        // Predicated region
        $region25: #{encoding_block.1} parent=11 // pred_check
          %p316 = pneg %p182
        $region26: #{encoding_block.1} parent=11 // pred_check_branch
          %318 = sbr.rel (%p316) target = $region28
        $region27: #{encoding_block.1} parent=11 // pred_region
          _
        $region28: #{encoding_block.1} parent=11 // pred_fallthru
          _
        // Predicated region
        $region29: #{encoding_block.1} parent=11 // pred_check
          %p319 = pneg %p203
        $region30: #{encoding_block.1} parent=11 // pred_check_branch
          %321 = sbr.rel (%p319) target = $region32
        $region31: #{encoding_block.1} parent=11 // pred_region
          _
        $region32: #{encoding_block.1} parent=11 // pred_fallthru
          _
        // Predicated region
        $region33: #{encoding_block.1} parent=11 // pred_check
          %p322 = pneg %p224
        $region34: #{encoding_block.1} parent=11 // pred_check_branch
          %324 = sbr.rel (%p322) target = $region36
        $region35: #{encoding_block.1} parent=11 // pred_region
          _
        $region36: #{encoding_block.1} parent=11 // pred_fallthru
          _
        // Predicated region
        $region37: #{encoding_block.1} parent=11 // pred_check
          %p325 = pneg %p245
        $region38: #{encoding_block.1} parent=11 // pred_check_branch
          %327 = sbr.rel (%p325) target = $region40
        $region39: #{encoding_block.1} parent=11 // pred_region
          _
        $region40: #{encoding_block.1} parent=11 // pred_fallthru
          _
        // Predicated region
        $region41: #{encoding_block.1} parent=11 // pred_check
          %p328 = pneg %p266
        $region42: #{encoding_block.1} parent=11 // pred_check_branch
          %330 = sbr.rel (%p328) target = $region44
        $region43: #{encoding_block.1} parent=11 // pred_region
          _
        $region44: #{encoding_block.1} parent=11 // pred_fallthru
          _
      $region12: #{encoding_block.1} parent=5 // pred_fallthru
        _
      %p331 = scmp.lt.s32.totalorder %s20, 2
      // Predicated region
      $region45: #{encoding_block.1} parent=5 // pred_check
        %p332 = pneg %p331
      $region46: #{encoding_block.1} parent=5 // pred_check_branch
        %334 = sbr.rel (%p332) target = $region48
      $region47: #{encoding_block.1} parent=5 // pred_region
        // Predicated region
        $region49: #{encoding_block.1} parent=47 // pred_check
          %p335 = pneg %p40
        $region50: #{encoding_block.1} parent=47 // pred_check_branch
          %337 = sbr.rel (%p335) target = $region52
        $region51: #{encoding_block.1} parent=47 // pred_region
          %p338 = scmp.lt.s32.totalorder %s20, 1
          %s339 = scalar_select %p338, %s20, 1
          %s340 = smul.addr %s339, 8
          %s341 = scalar_lea.vmem %s0, %s340
        $region52: #{encoding_block.1} parent=47 // pred_fallthru
          _
        // Predicated region
        $region53: #{encoding_block.1} parent=47 // pred_check
          %p342 = pneg %p66
        $region54: #{encoding_block.1} parent=47 // pred_check_branch
          %344 = sbr.rel (%p342) target = $region56
        $region55: #{encoding_block.1} parent=47 // pred_region
          %p345 = scmp.lt.s32.totalorder %s20, 1
          %s346 = scalar_select %p345, %s20, 1
          %s347 = smul.addr %s346, 2
          %s348 = smul.addr %s347, 8
          %s349 = scalar_lea.vmem %s1, %s348
        $region56: #{encoding_block.1} parent=47 // pred_fallthru
          _
        // Predicated region
        $region57: #{encoding_block.1} parent=47 // pred_check
          %p350 = pneg %p92
        $region58: #{encoding_block.1} parent=47 // pred_check_branch
          %352 = sbr.rel (%p350) target = $region60
        $region59: #{encoding_block.1} parent=47 // pred_region
          %p353 = scmp.lt.s32.totalorder %s20, 1
          %s354 = scalar_select %p353, %s20, 1
          %s355 = smul.addr %s354, 8
          %s356 = scalar_lea.vmem %s2, %s355
        $region60: #{encoding_block.1} parent=47 // pred_fallthru
          _
      $region48: #{encoding_block.1} parent=5 // pred_fallthru
        _
      %p357 = scmp.le.s32.totalorder 1, %s20
      %p358 = scmp.lt.s32.totalorder %s20, 3
      %p359 = pnand %p357, %p358
      %p360 = pneg %p359
      // Predicated region
      $region61: #{encoding_block.1} parent=5 // pred_check
        _
      $region62: #{encoding_block.1} parent=5 // pred_check_branch
        %362 = sbr.rel (%p359) target = $region64
      $region63: #{encoding_block.1} parent=5 // pred_region
        %s363 = ssub.s32 %s20, 1
        %p364 = scmp.lt.s32.totalorder %s25, 1
        %s365 = scalar_select %p364, %s25, 1
        %s366 = smul.addr %s365, 8
        %s367 = scalar_lea.vmem %s0, %s366
        %p368 = pneg %p46
        %p369 = pneg %p43
        %p370 = scmp.lt.s32.totalorder %s25, 1
        %s371 = scalar_select %p370, %s25, 1
        %s372 = smul.addr %s371, 2
        %s373 = smul.addr %s372, 8
        %s374 = scalar_lea.vmem %s1, %s373
        %p375 = pneg %p72
        %p376 = pneg %p69
        %p377 = scmp.lt.s32.totalorder %s25, 1
        %s378 = scalar_select %p377, %s25, 1
        %s379 = smul.addr %s378, 8
        %s380 = scalar_lea.vmem %s2, %s379
        %p381 = pneg %p98
        %p382 = pneg %p95
        %p383 = pneg %p119
        %p384 = pneg %p116
        %p385 = pneg %p140
        %p386 = pneg %p137
        %p387 = pneg %p161
        %p388 = pneg %p158
        %p389 = pneg %p182
        %p390 = pneg %p179
        %p391 = pneg %p203
        %p392 = pneg %p200
        %p393 = pneg %p224
        %p394 = pneg %p221
        %p395 = pneg %p245
        %p396 = pneg %p242
        %p397 = pneg %p266
        %p398 = pneg %p263
        %p399 = pneg %p292
        %p400 = pneg %p289
        %s401 = sand.u32 %s279, 1
        %s402 = scalar_lea.sflag [#allocation3], %s401
        %s403 = sand.u32 %s279, 1
        %s404 = smul.addr %s403, 8
        %s405 = scalar_lea.vmem [#allocation2], %s404
        %p406 = scmp.lt.s32.totalorder %s25, 1
        %s407 = scalar_select %p406, %s25, 1
        %s408 = smul.addr %s407, 8
        %s409 = scalar_lea.vmem %s0, %s408
        %p410 = scmp.lt.s32.totalorder %s25, 1
        %s411 = scalar_select %p410, %s25, 1
        %s412 = smul.addr %s411, 2
        %s413 = smul.addr %s412, 8
        %s414 = scalar_lea.vmem %s1, %s413
        %p415 = scmp.lt.s32.totalorder %s25, 1
        %s416 = scalar_select %p415, %s25, 1
        %s417 = smul.addr %s416, 8
        %s418 = scalar_lea.vmem %s2, %s417
        %v419 = vld [vmem:[%s409] sm:$0xff]
        %v420 = vld [vmem:[%s414] sm:$0xff]
        %v421 = vld [vmem:[%s414 + $0x8] sm:$0xf]
        %v422 = vld [vmem:[%s418] sm:$0xff]
        %v423 = vlaneseq
        %v424 = vshrl.u32 %v423, 7
        %v425 = vadd.s32 %v424, 8
        %v426 = vadd.s32 %v424, 16
        %v427 = vadd.s32 %v424, 24
        %v428 = vadd.s32 %v424, 32
        %v429 = vadd.s32 %v424, 40
        %v430 = vadd.s32 %v424, 48
        %v431 = vadd.s32 %v424, 56
        %v432 = vadd.s32 %v424, 64
        %v433 = vadd.s32 %v424, 72
        %v434 = vadd.s32 %v424, 80
        %v435 = vadd.s32 %v424, 88
        %v436 = vlaneseq
        %v437 = vand.u32 %v436, 127
        %v438 = vmul.u32 %v437, 12
        %vm439 = vcmp.ge.s32.totalorder %v424, %v438
        %vm440 = vcmp.ge.s32.totalorder %v425, %v438
        %vm441 = vcmp.ge.s32.totalorder %v426, %v438
        %vm442 = vcmp.ge.s32.totalorder %v427, %v438
        %vm443 = vcmp.ge.s32.totalorder %v428, %v438
        %vm444 = vcmp.ge.s32.totalorder %v429, %v438
        %vm445 = vcmp.ge.s32.totalorder %v430, %v438
        %vm446 = vcmp.ge.s32.totalorder %v431, %v438
        %vm447 = vcmp.ge.s32.totalorder %v432, %v438
        %vm448 = vcmp.ge.s32.totalorder %v433, %v438
        %vm449 = vcmp.ge.s32.totalorder %v434, %v438
        %vm450 = vcmp.ge.s32.totalorder %v435, %v438
        %v451 = vadd.s32 %v438, 12
        %vm452 = vcmp.lt.s32.totalorder %v424, %v451
        %vm453 = vcmp.lt.s32.totalorder %v425, %v451
        %vm454 = vcmp.lt.s32.totalorder %v426, %v451
        %vm455 = vcmp.lt.s32.totalorder %v427, %v451
        %vm456 = vcmp.lt.s32.totalorder %v428, %v451
        %vm457 = vcmp.lt.s32.totalorder %v429, %v451
        %vm458 = vcmp.lt.s32.totalorder %v430, %v451
        %vm459 = vcmp.lt.s32.totalorder %v431, %v451
        %vm460 = vcmp.lt.s32.totalorder %v432, %v451
        %vm461 = vcmp.lt.s32.totalorder %v433, %v451
        %vm462 = vcmp.lt.s32.totalorder %v434, %v451
        %vm463 = vcmp.lt.s32.totalorder %v435, %v451
        %vm464 = vmand %vm439, %vm452
        %vm465 = vmand %vm440, %vm453
        %vm466 = vmand %vm441, %vm454
        %vm467 = vmand %vm442, %vm455
        %vm468 = vmand %vm443, %vm456
        %vm469 = vmand %vm444, %vm457
        %vm470 = vmand %vm445, %vm458
        %vm471 = vmand %vm446, %vm459
        %vm472 = vmand %vm447, %vm460
        %vm473 = vmand %vm448, %vm461
        %vm474 = vmand %vm449, %vm462
        %vm475 = vmand %vm450, %vm463
        %v476 = vsel %vm464, 1, 0
        %v477 = vsel %vm465, 1, 0
        %v478 = vsel %vm466, 1, 0
        %v479 = vsel %vm467, 1, 0
        %v480 = vsel %vm468, 1, 0
        %v481 = vsel %vm469, 1, 0
        %v482 = vsel %vm470, 1, 0
        %v483 = vsel %vm471, 1, 0
        %v484 = vsel %vm472, 1, 0
        %v485 = vsel %vm473, 1, 0
        %v486 = vsel %vm474, 1, 0
        %v487 = vsel %vm475, 1, 0
        %v488 = vcvt.s32.f32 %v476
        %v489 = vcvt.s32.f32 %v477
        %v490 = vcvt.s32.f32 %v478
        %v491 = vcvt.s32.f32 %v479
        %v492 = vcvt.s32.f32 %v480
        %v493 = vcvt.s32.f32 %v481
        %v494 = vcvt.s32.f32 %v482
        %v495 = vcvt.s32.f32 %v483
        %v496 = vcvt.s32.f32 %v484
        %v497 = vcvt.s32.f32 %v485
        %v498 = vcvt.s32.f32 %v486
        %v499 = vcvt.s32.f32 %v487
        %v500 = vmul.u32 %v424, 12
        %vm501 = vcmp.ge.s32.totalorder %v437, %v500
        %v502 = vadd.s32 %v500, 12
        %vm503 = vcmp.lt.s32.totalorder %v437, %v502
        %vm504 = vmand %vm501, %vm503
        %v505 = vsel %vm504, 1, 0
        %v506 = vcvt.s32.f32 %v505
        %v507 = vcvt.s32.f32 %v437
        %v508 = vmul.f32 %v488, %v507
        %v509 = vmul.f32 %v489, %v507
        %v510 = vmul.f32 %v490, %v507
        %v511 = vmul.f32 %v491, %v507
        %v512 = vmul.f32 %v492, %v507
        %v513 = vmul.f32 %v493, %v507
        %v514 = vmul.f32 %v494, %v507
        %v515 = vmul.f32 %v495, %v507
        %v516 = vmul.f32 %v496, %v507
        %v517 = vmul.f32 %v497, %v507
        %v518 = vmul.f32 %v498, %v507
        %v519 = vmul.f32 %v499, %v507
        %vm520 = vcmask 64512
        %v521 = vsel %vm520, %v508, 0.0
        %522 = vadd.xlane.f32.xlu0 %v521
        %v523 = vpop.xlane.xlu0 %522
        %v524 = vsel %vm520, %v509, 0.0
        %525 = vadd.xlane.f32.xlu0 %v524
        %v526 = vpop.xlane.xlu0 %525
        %v527 = vsel %vm520, %v510, 0.0
        %528 = vadd.xlane.f32.xlu0 %v527
        %v529 = vpop.xlane.xlu0 %528
        %v530 = vsel %vm520, %v511, 0.0
        %531 = vadd.xlane.f32.xlu0 %v530
        %v532 = vpop.xlane.xlu0 %531
        %v533 = vsel %vm520, %v512, 0.0
        %534 = vadd.xlane.f32.xlu0 %v533
        %v535 = vpop.xlane.xlu0 %534
        %v536 = vsel %vm520, %v513, 0.0
        %537 = vadd.xlane.f32.xlu0 %v536
        %v538 = vpop.xlane.xlu0 %537
        %v539 = vsel %vm520, %v514, 0.0
        %540 = vadd.xlane.f32.xlu0 %v539
        %v541 = vpop.xlane.xlu0 %540
        %v542 = vsel %vm520, %v515, 0.0
        %543 = vadd.xlane.f32.xlu0 %v542
        %v544 = vpop.xlane.xlu0 %543
        %v545 = vsel %vm520, %v516, 0.0
        %546 = vadd.xlane.f32.xlu0 %v545
        %v547 = vpop.xlane.xlu0 %546
        %v548 = vsel %vm520, %v517, 0.0
        %549 = vadd.xlane.f32.xlu0 %v548
        %v550 = vpop.xlane.xlu0 %549
        %v551 = vsel %vm520, %v518, 0.0
        %552 = vadd.xlane.f32.xlu0 %v551
        %v553 = vpop.xlane.xlu0 %552
        %v554 = vsel %vm520, %v519, 0.0
        %555 = vadd.xlane.f32.xlu0 %v554
        %v556 = vpop.xlane.xlu0 %555
        %v557 = vcvt.s32.f32 %v424
        %v558 = vcvt.s32.f32 %v425
        %v559 = vcvt.s32.f32 %v426
        %v560 = vcvt.s32.f32 %v427
        %v561 = vcvt.s32.f32 %v428
        %v562 = vcvt.s32.f32 %v429
        %v563 = vcvt.s32.f32 %v430
        %v564 = vcvt.s32.f32 %v431
        %v565 = vcvt.s32.f32 %v432
        %v566 = vcvt.s32.f32 %v433
        %v567 = vcvt.s32.f32 %v434
        %v568 = vcvt.s32.f32 %v435
        %v569 = vmul.f32 %v523, 12.0
        %v570 = vmul.f32 %v526, 12.0
        %v571 = vmul.f32 %v529, 12.0
        %v572 = vmul.f32 %v532, 12.0
        %v573 = vmul.f32 %v535, 12.0
        %v574 = vmul.f32 %v538, 12.0
        %v575 = vmul.f32 %v541, 12.0
        %v576 = vmul.f32 %v544, 12.0
        %v577 = vmul.f32 %v547, 12.0
        %v578 = vmul.f32 %v550, 12.0
        %v579 = vmul.f32 %v553, 12.0
        %v580 = vmul.f32 %v556, 12.0
        %v581 = vsub.f32 %v557, %v569
        %v582 = vsub.f32 %v558, %v570
        %v583 = vsub.f32 %v559, %v571
        %v584 = vsub.f32 %v560, %v572
        %v585 = vsub.f32 %v561, %v573
        %v586 = vsub.f32 %v562, %v574
        %v587 = vsub.f32 %v563, %v575
        %v588 = vsub.f32 %v564, %v576
        %v589 = vsub.f32 %v565, %v577
        %v590 = vsub.f32 %v566, %v578
        %v591 = vsub.f32 %v567, %v579
        %v592 = vsub.f32 %v568, %v580
        %v593 = vsub.f32 %v581, %v507
        %v594 = vsub.f32 %v582, %v507
        %v595 = vsub.f32 %v583, %v507
        %v596 = vsub.f32 %v584, %v507
        %v597 = vsub.f32 %v585, %v507
        %v598 = vsub.f32 %v586, %v507
        %v599 = vsub.f32 %v587, %v507
        %v600 = vsub.f32 %v588, %v507
        %v601 = vsub.f32 %v589, %v507
        %v602 = vsub.f32 %v590, %v507
        %v603 = vsub.f32 %v591, %v507
        %v604 = vsub.f32 %v592, %v507
        %v605 = vand.u32 2147483647, %v593
        %v606 = vand.u32 2147483647, %v594
        %v607 = vand.u32 2147483647, %v595
        %v608 = vand.u32 2147483647, %v596
        %v609 = vand.u32 2147483647, %v597
        %v610 = vand.u32 2147483647, %v598
        %v611 = vand.u32 2147483647, %v599
        %v612 = vand.u32 2147483647, %v600
        %v613 = vand.u32 2147483647, %v601
        %v614 = vand.u32 2147483647, %v602
        %v615 = vand.u32 2147483647, %v603
        %v616 = vand.u32 2147483647, %v604
        %vm617 = vcmp.lt.f32.partialorder %v605, 0.5
        %vm618 = vcmp.lt.f32.partialorder %v606, 0.5
        %vm619 = vcmp.lt.f32.partialorder %v607, 0.5
        %vm620 = vcmp.lt.f32.partialorder %v608, 0.5
        %vm621 = vcmp.lt.f32.partialorder %v609, 0.5
        %vm622 = vcmp.lt.f32.partialorder %v610, 0.5
        %vm623 = vcmp.lt.f32.partialorder %v611, 0.5
        %vm624 = vcmp.lt.f32.partialorder %v612, 0.5
        %vm625 = vcmp.lt.f32.partialorder %v613, 0.5
        %vm626 = vcmp.lt.f32.partialorder %v614, 0.5
        %vm627 = vcmp.lt.f32.partialorder %v615, 0.5
        %vm628 = vcmp.lt.f32.partialorder %v616, 0.5
        %v629 = vsel %vm617, 1, 0
        %v630 = vsel %vm618, 1, 0
        %v631 = vsel %vm619, 1, 0
        %v632 = vsel %vm620, 1, 0
        %v633 = vsel %vm621, 1, 0
        %v634 = vsel %vm622, 1, 0
        %v635 = vsel %vm623, 1, 0
        %v636 = vsel %vm624, 1, 0
        %v637 = vsel %vm625, 1, 0
        %v638 = vsel %vm626, 1, 0
        %v639 = vsel %vm627, 1, 0
        %v640 = vsel %vm628, 1, 0
        %v641 = vcvt.s32.f32 %v629
        %v642 = vcvt.s32.f32 %v630
        %v643 = vcvt.s32.f32 %v631
        %v644 = vcvt.s32.f32 %v632
        %v645 = vcvt.s32.f32 %v633
        %v646 = vcvt.s32.f32 %v634
        %v647 = vcvt.s32.f32 %v635
        %v648 = vcvt.s32.f32 %v636
        %v649 = vcvt.s32.f32 %v637
        %v650 = vcvt.s32.f32 %v638
        %v651 = vcvt.s32.f32 %v639
        %v652 = vcvt.s32.f32 %v640
        %v653 = vmul.u32 %v437, 8
        %vm654 = vcmp.ge.s32.totalorder %v424, %v653
        %vm655 = vcmp.ge.s32.totalorder %v425, %v653
        %vm656 = vcmp.ge.s32.totalorder %v426, %v653
        %vm657 = vcmp.ge.s32.totalorder %v427, %v653
        %v658 = vadd.s32 %v653, 8
        %vm659 = vcmp.lt.s32.totalorder %v424, %v658
        %vm660 = vcmp.lt.s32.totalorder %v425, %v658
        %vm661 = vcmp.lt.s32.totalorder %v426, %v658
        %vm662 = vcmp.lt.s32.totalorder %v427, %v658
        %vm663 = vmand %vm654, %vm659
        %vm664 = vmand %vm655, %vm660
        %vm665 = vmand %vm656, %vm661
        %vm666 = vmand %vm657, %vm662
        %v667 = vsel %vm663, 1, 0
        %v668 = vsel %vm664, 1, 0
        %v669 = vsel %vm665, 1, 0
        %v670 = vsel %vm666, 1, 0
        %v671 = vcvt.s32.f32 %v667
        %v672 = vcvt.s32.f32 %v668
        %v673 = vcvt.s32.f32 %v669
        %v674 = vcvt.s32.f32 %v670
        %v675 = vmul.f32 %v671, 0.35355338
        %v676 = vmul.f32 %v672, 0.35355338
        %v677 = vmul.f32 %v673, 0.35355338
        %v678 = vmul.f32 %v674, 0.35355338
        %v679 = vmul.u32 %v424, 8
        %vm680 = vcmp.ge.s32.totalorder %v437, %v679
        %v681 = vadd.s32 %v679, 8
        %vm682 = vcmp.lt.s32.totalorder %v437, %v681
        %vm683 = vmand %vm680, %vm682
        %v684 = vsel %vm683, 1, 0
        %v685 = vcvt.s32.f32 %v684
        %v686 = vld [vmem:[%s3] sm:$0xff]
        %v687 = vld [vmem:[%s3 + $0x8] sm:$0xff]
        %v688 = vld [vmem:[%s3 + $0x10] sm:$0xff]
        %v689 = vld [vmem:[%s3 + $0x18] sm:$0xff]
        %vm690 = vcmask 261120
        %v692 = vsel %vm690, %v419, 0
        %694 = vmatpush.msra.mxu0 0.0
        %695 = vmatpush.msra.mxu0 0.0
        %696 = vmatpush.msra.mxu0 0.0
        %697 = vmatpush.msra.mxu0 0.0
        %698 = vmatpush.msra.mxu0 0.0
        %699 = vmatpush.msra.mxu0 0.0
        %700 = vmatpush.msra.mxu0 0.0
        %701 = vmatpush.msra.mxu0 0.0
        %702 = vmatpush.msra.mxu0 0.0
        %703 = vmatpush.msra.mxu0 0.0
        %704 = vmatpush.msra.mxu0 0.0
        %705 = vmatpush.msra.mxu0 0.0
        %706 = vmatpush.msra.mxu0 %v689
        %707 = vmatpush.msra.mxu0 %v688
        %708 = vmatpush.msra.mxu0 %v687
        %709 = vmatpush.msra.mxu0 %v686
        %710 = vmatmul.f32.gmra.mxu0 %v692
        %v711 = vpop.f32.mrf.mxu0
        %v712 = vadd.f32 0.0, %v711
        %713 = vdwg.mxu0
        %v714 = vld [vmem:[%s4] sm:$0xff]
        %v715 = vld [vmem:[%s4 + $0x8] sm:$0xff]
        %v716 = vld [vmem:[%s4 + $0x10] sm:$0xff]
        %v717 = vld [vmem:[%s4 + $0x18] sm:$0xff]
        %v719 = vsel %vm690, %v420, 0
        %v722 = vsel %vm690, %v421, 0
        %724 = vmatpush.msra.mxu0 0.0
        %725 = vmatpush.msra.mxu0 0.0
        %726 = vmatpush.msra.mxu0 0.0
        %727 = vmatpush.msra.mxu0 0.0
        %728 = vmatpush.msra.mxu0 0.0
        %729 = vmatpush.msra.mxu0 0.0
        %730 = vmatpush.msra.mxu0 0.0
        %731 = vmatpush.msra.mxu0 0.0
        %732 = vmatpush.msra.mxu0 0.0
        %733 = vmatpush.msra.mxu0 0.0
        %734 = vmatpush.msra.mxu0 0.0
        %735 = vmatpush.msra.mxu0 0.0
        %736 = vmatpush.msra.mxu0 %v717
        %737 = vmatpush.msra.mxu0 %v716
        %738 = vmatpush.msra.mxu0 %v715
        %739 = vmatpush.msra.mxu0 %v714
        %740 = vmatmul.f32.gmra.mxu0 %v719
        %v741 = vpop.f32.mrf.mxu0
        %v742 = vadd.f32 0.0, %v741
        %743 = vmatmul.f32.gmra.mxu0 %v722
        %v744 = vpop.f32.mrf.mxu0
        %v745 = vadd.f32 0.0, %v744
        %746 = vdwg.mxu0
        %v748 = vsel %vm520, %v488, 0
        %v751 = vsel %vm520, %v489, 0
        %v754 = vsel %vm520, %v490, 0
        %v757 = vsel %vm520, %v491, 0
        %v760 = vsel %vm520, %v492, 0
        %v763 = vsel %vm520, %v493, 0
        %v766 = vsel %vm520, %v494, 0
        %v769 = vsel %vm520, %v495, 0
        %v772 = vsel %vm520, %v496, 0
        %v775 = vsel %vm520, %v497, 0
        %v778 = vsel %vm520, %v498, 0
        %v781 = vsel %vm520, %v499, 0
        %783 = vmatpush.msra.mxu0 0.0
        %784 = vmatpush.msra.mxu0 0.0
        %785 = vmatpush.msra.mxu0 0.0
        %786 = vmatpush.msra.mxu0 0.0
        %787 = vmatpush.msra.mxu0 0.0
        %788 = vmatpush.msra.mxu0 0.0
        %789 = vmatpush.msra.mxu0 0.0
        %790 = vmatpush.msra.mxu0 0.0
        %791 = vmatpush.msra.mxu0 0.0
        %792 = vmatpush.msra.mxu0 0.0
        %793 = vmatpush.msra.mxu0 0.0
        %794 = vmatpush.msra.mxu0 0.0
        %795 = vmatpush.msra.mxu0 0.0
        %796 = vmatpush.msra.mxu0 0.0
        %797 = vmatpush.msra.mxu0 0.0
        %798 = vmatpush.msra.mxu0 %v712
        %799 = vmatmul.f32.gmra.mxu0 %v748
        %v800 = vpop.f32.mrf.mxu0
        %v801 = vadd.f32 0.0, %v800
        %802 = vmatmul.f32.gmra.mxu0 %v751
        %v803 = vpop.f32.mrf.mxu0
        %v804 = vadd.f32 0.0, %v803
        %805 = vmatmul.f32.gmra.mxu0 %v754
        %v806 = vpop.f32.mrf.mxu0
        %v807 = vadd.f32 0.0, %v806
        %808 = vmatmul.f32.gmra.mxu0 %v757
        %v809 = vpop.f32.mrf.mxu0
        %v810 = vadd.f32 0.0, %v809
        %811 = vmatmul.f32.gmra.mxu0 %v760
        %v812 = vpop.f32.mrf.mxu0
        %v813 = vadd.f32 0.0, %v812
        %814 = vmatmul.f32.gmra.mxu0 %v763
        %v815 = vpop.f32.mrf.mxu0
        %v816 = vadd.f32 0.0, %v815
        %817 = vmatmul.f32.gmra.mxu0 %v766
        %v818 = vpop.f32.mrf.mxu0
        %v819 = vadd.f32 0.0, %v818
        %820 = vmatmul.f32.gmra.mxu0 %v769
        %v821 = vpop.f32.mrf.mxu0
        %v822 = vadd.f32 0.0, %v821
        %823 = vmatmul.f32.gmra.mxu0 %v772
        %v824 = vpop.f32.mrf.mxu0
        %v825 = vadd.f32 0.0, %v824
        %826 = vmatmul.f32.gmra.mxu0 %v775
        %v827 = vpop.f32.mrf.mxu0
        %v828 = vadd.f32 0.0, %v827
        %829 = vmatmul.f32.gmra.mxu0 %v778
        %v830 = vpop.f32.mrf.mxu0
        %v831 = vadd.f32 0.0, %v830
        %832 = vmatmul.f32.gmra.mxu0 %v781
        %v833 = vpop.f32.mrf.mxu0
        %v834 = vadd.f32 0.0, %v833
        %835 = vdwg.mxu0
        %vm836 = vcmask 97280
        %v838 = vsel %vm836, %v641, 0
        %v841 = vsel %vm836, %v642, 0
        %v844 = vsel %vm836, %v643, 0
        %v847 = vsel %vm836, %v644, 0
        %v850 = vsel %vm836, %v645, 0
        %v853 = vsel %vm836, %v646, 0
        %v856 = vsel %vm836, %v647, 0
        %v859 = vsel %vm836, %v648, 0
        %v862 = vsel %vm836, %v649, 0
        %v865 = vsel %vm836, %v650, 0
        %v868 = vsel %vm836, %v651, 0
        %v871 = vsel %vm836, %v652, 0
        %vm873 = vcmask 1043456
        %v875 = vsel %vm873, %v745, 0
        %877 = vmatpush.msra.mxu0 0.0
        %878 = vmatpush.msra.mxu0 0.0
        %879 = vmatpush.msra.mxu0 0.0
        %880 = vmatpush.msra.mxu0 0.0
        %881 = vmatpush.msra.mxu0 0.0
        %882 = vmatpush.msra.mxu0 0.0
        %883 = vmatpush.msra.mxu0 0.0
        %884 = vmatpush.msra.mxu0 0.0
        %885 = vmatpush.msra.mxu0 0.0
        %886 = vmatpush.msra.mxu0 0.0
        %887 = vmatpush.msra.mxu0 0.0
        %888 = vmatpush.msra.mxu0 0.0
        %889 = vmatpush.msra.mxu0 0.0
        %890 = vmatpush.msra.mxu0 0.0
        %891 = vmatpush.msra.mxu0 %v875
        %892 = vmatpush.msra.mxu0 %v742
        %893 = vmatmul.f32.gmra.mxu0 %v838
        %v894 = vpop.f32.mrf.mxu0
        %v895 = vadd.f32 0.0, %v894
        %896 = vmatmul.f32.gmra.mxu0 %v841
        %v897 = vpop.f32.mrf.mxu0
        %v898 = vadd.f32 0.0, %v897
        %899 = vmatmul.f32.gmra.mxu0 %v844
        %v900 = vpop.f32.mrf.mxu0
        %v901 = vadd.f32 0.0, %v900
        %902 = vmatmul.f32.gmra.mxu0 %v847
        %v903 = vpop.f32.mrf.mxu0
        %v904 = vadd.f32 0.0, %v903
        %905 = vmatmul.f32.gmra.mxu0 %v850
        %v906 = vpop.f32.mrf.mxu0
        %v907 = vadd.f32 0.0, %v906
        %908 = vmatmul.f32.gmra.mxu0 %v853
        %v909 = vpop.f32.mrf.mxu0
        %v910 = vadd.f32 0.0, %v909
        %911 = vmatmul.f32.gmra.mxu0 %v856
        %v912 = vpop.f32.mrf.mxu0
        %v913 = vadd.f32 0.0, %v912
        %914 = vmatmul.f32.gmra.mxu0 %v859
        %v915 = vpop.f32.mrf.mxu0
        %v916 = vadd.f32 0.0, %v915
        %917 = vmatmul.f32.gmra.mxu0 %v862
        %v918 = vpop.f32.mrf.mxu0
        %v919 = vadd.f32 0.0, %v918
        %920 = vmatmul.f32.gmra.mxu0 %v865
        %v921 = vpop.f32.mrf.mxu0
        %v922 = vadd.f32 0.0, %v921
        %923 = vmatmul.f32.gmra.mxu0 %v868
        %v924 = vpop.f32.mrf.mxu0
        %v925 = vadd.f32 0.0, %v924
        %926 = vmatmul.f32.gmra.mxu0 %v871
        %v927 = vpop.f32.mrf.mxu0
        %v928 = vadd.f32 0.0, %v927
        %929 = vdwg.mxu0
        %930 = vmatpush.msra.mxu0 0.0
        %931 = vmatpush.msra.mxu0 0.0
        %932 = vmatpush.msra.mxu0 0.0
        %933 = vmatpush.msra.mxu0 0.0
        %934 = vmatpush.msra.mxu0 0.0
        %935 = vmatpush.msra.mxu0 0.0
        %936 = vmatpush.msra.mxu0 0.0
        %937 = vmatpush.msra.mxu0 0.0
        %938 = vmatpush.msra.mxu0 0.0
        %939 = vmatpush.msra.mxu0 0.0
        %940 = vmatpush.msra.mxu0 0.0
        %941 = vmatpush.msra.mxu0 0.0
        %942 = vmatpush.msra.mxu0 0.0
        %943 = vmatpush.msra.mxu0 0.0
        %944 = vmatpush.msra.mxu0 0.0
        %945 = vmatpush.msra.mxu0 %v422
        %946 = vmatmul.f32.gmra.mxu0 %v748
        %v947 = vpop.f32.mrf.mxu0
        %v948 = vadd.f32 0.0, %v947
        %949 = vmatmul.f32.gmra.mxu0 %v751
        %v950 = vpop.f32.mrf.mxu0
        %v951 = vadd.f32 0.0, %v950
        %952 = vmatmul.f32.gmra.mxu0 %v754
        %v953 = vpop.f32.mrf.mxu0
        %v954 = vadd.f32 0.0, %v953
        %955 = vmatmul.f32.gmra.mxu0 %v757
        %v956 = vpop.f32.mrf.mxu0
        %v957 = vadd.f32 0.0, %v956
        %958 = vmatmul.f32.gmra.mxu0 %v760
        %v959 = vpop.f32.mrf.mxu0
        %v960 = vadd.f32 0.0, %v959
        %961 = vmatmul.f32.gmra.mxu0 %v763
        %v962 = vpop.f32.mrf.mxu0
        %v963 = vadd.f32 0.0, %v962
        %964 = vmatmul.f32.gmra.mxu0 %v766
        %v965 = vpop.f32.mrf.mxu0
        %v966 = vadd.f32 0.0, %v965
        %967 = vmatmul.f32.gmra.mxu0 %v769
        %v968 = vpop.f32.mrf.mxu0
        %v969 = vadd.f32 0.0, %v968
        %970 = vmatmul.f32.gmra.mxu0 %v772
        %v971 = vpop.f32.mrf.mxu0
        %v972 = vadd.f32 0.0, %v971
        %973 = vmatmul.f32.gmra.mxu0 %v775
        %v974 = vpop.f32.mrf.mxu0
        %v975 = vadd.f32 0.0, %v974
        %976 = vmatmul.f32.gmra.mxu0 %v778
        %v977 = vpop.f32.mrf.mxu0
        %v978 = vadd.f32 0.0, %v977
        %979 = vmatmul.f32.gmra.mxu0 %v781
        %v980 = vpop.f32.mrf.mxu0
        %v981 = vadd.f32 0.0, %v980
        %982 = vdwg.mxu0
        %v983 = vmul.f32 %v948, %v641
        %v984 = vmul.f32 %v951, %v642
        %v985 = vmul.f32 %v954, %v643
        %v986 = vmul.f32 %v957, %v644
        %v987 = vmul.f32 %v960, %v645
        %v988 = vmul.f32 %v963, %v646
        %v989 = vmul.f32 %v966, %v647
        %v990 = vmul.f32 %v969, %v648
        %v991 = vmul.f32 %v972, %v649
        %v992 = vmul.f32 %v975, %v650
        %v993 = vmul.f32 %v978, %v651
        %v994 = vmul.f32 %v981, %v652
        %v995 = vsel %vm836, %v983, 0.0
        %996 = vadd.xlane.f32.xlu0 %v995
        %v997 = vpop.xlane.xlu0 %996
        %v998 = vsel %vm836, %v984, 0.0
        %999 = vadd.xlane.f32.xlu0 %v998
        %v1000 = vpop.xlane.xlu0 %999
        %v1001 = vsel %vm836, %v985, 0.0
        %1002 = vadd.xlane.f32.xlu0 %v1001
        %v1003 = vpop.xlane.xlu0 %1002
        %v1004 = vsel %vm836, %v986, 0.0
        %1005 = vadd.xlane.f32.xlu0 %v1004
        %v1006 = vpop.xlane.xlu0 %1005
        %v1007 = vsel %vm836, %v987, 0.0
        %1008 = vadd.xlane.f32.xlu0 %v1007
        %v1009 = vpop.xlane.xlu0 %1008
        %v1010 = vsel %vm836, %v988, 0.0
        %1011 = vadd.xlane.f32.xlu0 %v1010
        %v1012 = vpop.xlane.xlu0 %1011
        %v1013 = vsel %vm836, %v989, 0.0
        %1014 = vadd.xlane.f32.xlu0 %v1013
        %v1015 = vpop.xlane.xlu0 %1014
        %v1016 = vsel %vm836, %v990, 0.0
        %1017 = vadd.xlane.f32.xlu0 %v1016
        %v1018 = vpop.xlane.xlu0 %1017
        %v1019 = vsel %vm836, %v991, 0.0
        %1020 = vadd.xlane.f32.xlu0 %v1019
        %v1021 = vpop.xlane.xlu0 %1020
        %v1022 = vsel %vm836, %v992, 0.0
        %1023 = vadd.xlane.f32.xlu0 %v1022
        %v1024 = vpop.xlane.xlu0 %1023
        %v1025 = vsel %vm836, %v993, 0.0
        %1026 = vadd.xlane.f32.xlu0 %v1025
        %v1027 = vpop.xlane.xlu0 %1026
        %v1028 = vsel %vm836, %v994, 0.0
        %1029 = vadd.xlane.f32.xlu0 %v1028
        %v1030 = vpop.xlane.xlu0 %1029
        %v1031 = vmul.f32 %v801, %v895
        %v1032 = vmul.f32 %v804, %v898
        %v1033 = vmul.f32 %v807, %v901
        %v1034 = vmul.f32 %v810, %v904
        %v1035 = vmul.f32 %v813, %v907
        %v1036 = vmul.f32 %v816, %v910
        %v1037 = vmul.f32 %v819, %v913
        %v1038 = vmul.f32 %v822, %v916
        %v1039 = vmul.f32 %v825, %v919
        %v1040 = vmul.f32 %v828, %v922
        %v1041 = vmul.f32 %v831, %v925
        %v1042 = vmul.f32 %v834, %v928
        %v1044 = vsel %vm690, %v1031, 0
        %v1047 = vsel %vm690, %v1032, 0
        %v1050 = vsel %vm690, %v1033, 0
        %v1053 = vsel %vm690, %v1034, 0
        %v1056 = vsel %vm690, %v1035, 0
        %v1059 = vsel %vm690, %v1036, 0
        %v1062 = vsel %vm690, %v1037, 0
        %v1065 = vsel %vm690, %v1038, 0
        %v1068 = vsel %vm690, %v1039, 0
        %v1071 = vsel %vm690, %v1040, 0
        %v1074 = vsel %vm690, %v1041, 0
        %v1077 = vsel %vm690, %v1042, 0
        %1079 = vmatpush.msra.mxu0 0.0
        %1080 = vmatpush.msra.mxu0 0.0
        %1081 = vmatpush.msra.mxu0 0.0
        %1082 = vmatpush.msra.mxu0 0.0
        %1083 = vmatpush.msra.mxu0 0.0
        %1084 = vmatpush.msra.mxu0 0.0
        %1085 = vmatpush.msra.mxu0 0.0
        %1086 = vmatpush.msra.mxu0 0.0
        %1087 = vmatpush.msra.mxu0 0.0
        %1088 = vmatpush.msra.mxu0 0.0
        %1089 = vmatpush.msra.mxu0 0.0
        %1090 = vmatpush.msra.mxu0 0.0
        %1091 = vmatpush.msra.mxu0 %v678
        %1092 = vmatpush.msra.mxu0 %v677
        %1093 = vmatpush.msra.mxu0 %v676
        %1094 = vmatpush.msra.mxu0 %v675
        %1095 = vmatmul.f32.gmra.mxu0 %v1044
        %v1096 = vpop.f32.mrf.mxu0
        %v1097 = vadd.f32 0.0, %v1096
        %1098 = vmatmul.f32.gmra.mxu0 %v1047
        %v1099 = vpop.f32.mrf.mxu0
        %v1100 = vadd.f32 0.0, %v1099
        %1101 = vmatmul.f32.gmra.mxu0 %v1050
        %v1102 = vpop.f32.mrf.mxu0
        %v1103 = vadd.f32 0.0, %v1102
        %1104 = vmatmul.f32.gmra.mxu0 %v1053
        %v1105 = vpop.f32.mrf.mxu0
        %v1106 = vadd.f32 0.0, %v1105
        %1107 = vmatmul.f32.gmra.mxu0 %v1056
        %v1108 = vpop.f32.mrf.mxu0
        %v1109 = vadd.f32 0.0, %v1108
        %1110 = vmatmul.f32.gmra.mxu0 %v1059
        %v1111 = vpop.f32.mrf.mxu0
        %v1112 = vadd.f32 0.0, %v1111
        %1113 = vmatmul.f32.gmra.mxu0 %v1062
        %v1114 = vpop.f32.mrf.mxu0
        %v1115 = vadd.f32 0.0, %v1114
        %1116 = vmatmul.f32.gmra.mxu0 %v1065
        %v1117 = vpop.f32.mrf.mxu0
        %v1118 = vadd.f32 0.0, %v1117
        %1119 = vmatmul.f32.gmra.mxu0 %v1068
        %v1120 = vpop.f32.mrf.mxu0
        %v1121 = vadd.f32 0.0, %v1120
        %1122 = vmatmul.f32.gmra.mxu0 %v1071
        %v1123 = vpop.f32.mrf.mxu0
        %v1124 = vadd.f32 0.0, %v1123
        %1125 = vmatmul.f32.gmra.mxu0 %v1074
        %v1126 = vpop.f32.mrf.mxu0
        %v1127 = vadd.f32 0.0, %v1126
        %1128 = vmatmul.f32.gmra.mxu0 %v1077
        %v1129 = vpop.f32.mrf.mxu0
        %v1130 = vadd.f32 0.0, %v1129
        %1131 = vdwg.mxu0
        %v1132 = vld [vmem:[%s10 + $0x9] sm:$0x1]
        %v1133 = vld [vmem:[%s10 + $0x7] sm:$0x1]
        %v1134 = vld [vmem:[%s10 + $0x8] sm:$0x1]
        %v1135 = vld [vmem:[%s5] sm:$0xf]
        %v1136 = vperm.slane %v1132, 0
        %v1137 = vmul.f32 %v997, %v1136
        %v1138 = vmul.f32 %v1000, %v1136
        %v1139 = vmul.f32 %v1003, %v1136
        %v1140 = vmul.f32 %v1006, %v1136
        %v1141 = vmul.f32 %v1009, %v1136
        %v1142 = vmul.f32 %v1012, %v1136
        %v1143 = vmul.f32 %v1015, %v1136
        %v1144 = vmul.f32 %v1018, %v1136
        %v1145 = vmul.f32 %v1021, %v1136
        %v1146 = vmul.f32 %v1024, %v1136
        %v1147 = vmul.f32 %v1027, %v1136
        %v1148 = vmul.f32 %v1030, %v1136
        %vm1149 = vcmask 31744
        %v1151 = vsel %vm1149, %v1097, 0
        %v1154 = vsel %vm1149, %v1100, 0
        %v1157 = vsel %vm1149, %v1103, 0
        %v1160 = vsel %vm1149, %v1106, 0
        %v1163 = vsel %vm1149, %v1109, 0
        %v1166 = vsel %vm1149, %v1112, 0
        %v1169 = vsel %vm1149, %v1115, 0
        %v1172 = vsel %vm1149, %v1118, 0
        %v1175 = vsel %vm1149, %v1121, 0
        %v1178 = vsel %vm1149, %v1124, 0
        %v1181 = vsel %vm1149, %v1127, 0
        %v1184 = vsel %vm1149, %v1130, 0
        %v1187 = vsel %vm873, %v1135, 0
        %1189 = vmatpush.msra.mxu0 0.0
        %1190 = vmatpush.msra.mxu0 0.0
        %1191 = vmatpush.msra.mxu0 0.0
        %1192 = vmatpush.msra.mxu0 0.0
        %1193 = vmatpush.msra.mxu0 0.0
        %1194 = vmatpush.msra.mxu0 0.0
        %1195 = vmatpush.msra.mxu0 0.0
        %1196 = vmatpush.msra.mxu0 0.0
        %1197 = vmatpush.msra.mxu0 0.0
        %1198 = vmatpush.msra.mxu0 0.0
        %1199 = vmatpush.msra.mxu0 0.0
        %1200 = vmatpush.msra.mxu0 0.0
        %1201 = vmatpush.msra.mxu0 0.0
        %1202 = vmatpush.msra.mxu0 0.0
        %1203 = vmatpush.msra.mxu0 0.0
        %1204 = vmatpush.msra.mxu0 %v1187
        %1205 = vmatmul.f32.gmra.mxu0 %v1151
        %v1206 = vpop.f32.mrf.mxu0
        %v1207 = vadd.f32 %v1137, %v1206
        %1208 = vmatmul.f32.gmra.mxu0 %v1154
        %v1209 = vpop.f32.mrf.mxu0
        %v1210 = vadd.f32 %v1138, %v1209
        %1211 = vmatmul.f32.gmra.mxu0 %v1157
        %v1212 = vpop.f32.mrf.mxu0
        %v1213 = vadd.f32 %v1139, %v1212
        %1214 = vmatmul.f32.gmra.mxu0 %v1160
        %v1215 = vpop.f32.mrf.mxu0
        %v1216 = vadd.f32 %v1140, %v1215
        %1217 = vmatmul.f32.gmra.mxu0 %v1163
        %v1218 = vpop.f32.mrf.mxu0
        %v1219 = vadd.f32 %v1141, %v1218
        %1220 = vmatmul.f32.gmra.mxu0 %v1166
        %v1221 = vpop.f32.mrf.mxu0
        %v1222 = vadd.f32 %v1142, %v1221
        %1223 = vmatmul.f32.gmra.mxu0 %v1169
        %v1224 = vpop.f32.mrf.mxu0
        %v1225 = vadd.f32 %v1143, %v1224
        %1226 = vmatmul.f32.gmra.mxu0 %v1172
        %v1227 = vpop.f32.mrf.mxu0
        %v1228 = vadd.f32 %v1144, %v1227
        %1229 = vmatmul.f32.gmra.mxu0 %v1175
        %v1230 = vpop.f32.mrf.mxu0
        %v1231 = vadd.f32 %v1145, %v1230
        %1232 = vmatmul.f32.gmra.mxu0 %v1178
        %v1233 = vpop.f32.mrf.mxu0
        %v1234 = vadd.f32 %v1146, %v1233
        %1235 = vmatmul.f32.gmra.mxu0 %v1181
        %v1236 = vpop.f32.mrf.mxu0
        %v1237 = vadd.f32 %v1147, %v1236
        %1238 = vmatmul.f32.gmra.mxu0 %v1184
        %v1239 = vpop.f32.mrf.mxu0
        %v1240 = vadd.f32 %v1148, %v1239
        %1241 = vdwg.mxu0
        %v1242 = vperm.slane %v1133, 0
        %v1243 = vadd.f32 %v1207, %v1242
        %v1244 = vadd.f32 %v1210, %v1242
        %v1245 = vadd.f32 %v1213, %v1242
        %v1246 = vadd.f32 %v1216, %v1242
        %v1247 = vadd.f32 %v1219, %v1242
        %v1248 = vadd.f32 %v1222, %v1242
        %v1249 = vadd.f32 %v1225, %v1242
        %v1250 = vadd.f32 %v1228, %v1242
        %v1251 = vadd.f32 %v1231, %v1242
        %v1252 = vadd.f32 %v1234, %v1242
        %v1253 = vadd.f32 %v1237, %v1242
        %v1254 = vadd.f32 %v1240, %v1242
        %v1255 = vmax.f32 %v1243, 0.0
        %v1256 = vmax.f32 %v1244, 0.0
        %v1257 = vmax.f32 %v1245, 0.0
        %v1258 = vmax.f32 %v1246, 0.0
        %v1259 = vmax.f32 %v1247, 0.0
        %v1260 = vmax.f32 %v1248, 0.0
        %v1261 = vmax.f32 %v1249, 0.0
        %v1262 = vmax.f32 %v1250, 0.0
        %v1263 = vmax.f32 %v1251, 0.0
        %v1264 = vmax.f32 %v1252, 0.0
        %v1265 = vmax.f32 %v1253, 0.0
        %v1266 = vmax.f32 %v1254, 0.0
        %v1267 = vld [vmem:[%s6] sm:$0xff]
        %v1268 = vld [vmem:[%s6 + $0x8] sm:$0xff]
        %v1269 = vld [vmem:[%s6 + $0x10] sm:$0xff]
        %v1270 = vld [vmem:[%s6 + $0x18] sm:$0xff]
        %v1271 = vld [vmem:[%s6 + $0x20] sm:$0xff]
        %v1272 = vld [vmem:[%s6 + $0x28] sm:$0xff]
        %v1273 = vld [vmem:[%s6 + $0x30] sm:$0xff]
        %v1274 = vld [vmem:[%s6 + $0x38] sm:$0xff]
        %v1275 = vperm.slane %v1134, 0
        %vm1276 = vcmask 523264
        %v1278 = vsel %vm1276, %v1255, 0
        %v1281 = vsel %vm1276, %v1256, 0
        %v1284 = vsel %vm1276, %v1257, 0
        %v1287 = vsel %vm1276, %v1258, 0
        %v1290 = vsel %vm1276, %v1259, 0
        %v1293 = vsel %vm1276, %v1260, 0
        %v1296 = vsel %vm1276, %v1261, 0
        %v1299 = vsel %vm1276, %v1262, 0
        %v1302 = vsel %vm1276, %v1263, 0
        %v1305 = vsel %vm1276, %v1264, 0
        %v1308 = vsel %vm1276, %v1265, 0
        %v1311 = vsel %vm1276, %v1266, 0
        %1313 = vmatpush.msra.mxu0 0.0
        %1314 = vmatpush.msra.mxu0 0.0
        %1315 = vmatpush.msra.mxu0 0.0
        %1316 = vmatpush.msra.mxu0 0.0
        %1317 = vmatpush.msra.mxu0 0.0
        %1318 = vmatpush.msra.mxu0 0.0
        %1319 = vmatpush.msra.mxu0 0.0
        %1320 = vmatpush.msra.mxu0 0.0
        %1321 = vmatpush.msra.mxu0 %v1274
        %1322 = vmatpush.msra.mxu0 %v1273
        %1323 = vmatpush.msra.mxu0 %v1272
        %1324 = vmatpush.msra.mxu0 %v1271
        %1325 = vmatpush.msra.mxu0 %v1270
        %1326 = vmatpush.msra.mxu0 %v1269
        %1327 = vmatpush.msra.mxu0 %v1268
        %1328 = vmatpush.msra.mxu0 %v1267
        %1329 = vmatmul.f32.gmra.mxu0 %v1278
        %v1330 = vpop.f32.mrf.mxu0
        %v1331 = vadd.f32 %v1275, %v1330
        %1332 = vmatmul.f32.gmra.mxu0 %v1281
        %v1333 = vpop.f32.mrf.mxu0
        %v1334 = vadd.f32 %v1275, %v1333
        %1335 = vmatmul.f32.gmra.mxu0 %v1284
        %v1336 = vpop.f32.mrf.mxu0
        %v1337 = vadd.f32 %v1275, %v1336
        %1338 = vmatmul.f32.gmra.mxu0 %v1287
        %v1339 = vpop.f32.mrf.mxu0
        %v1340 = vadd.f32 %v1275, %v1339
        %1341 = vmatmul.f32.gmra.mxu0 %v1290
        %v1342 = vpop.f32.mrf.mxu0
        %v1343 = vadd.f32 %v1275, %v1342
        %1344 = vmatmul.f32.gmra.mxu0 %v1293
        %v1345 = vpop.f32.mrf.mxu0
        %v1346 = vadd.f32 %v1275, %v1345
        %1347 = vmatmul.f32.gmra.mxu0 %v1296
        %v1348 = vpop.f32.mrf.mxu0
        %v1349 = vadd.f32 %v1275, %v1348
        %1350 = vmatmul.f32.gmra.mxu0 %v1299
        %v1351 = vpop.f32.mrf.mxu0
        %v1352 = vadd.f32 %v1275, %v1351
        %1353 = vmatmul.f32.gmra.mxu0 %v1302
        %v1354 = vpop.f32.mrf.mxu0
        %v1355 = vadd.f32 %v1275, %v1354
        %1356 = vmatmul.f32.gmra.mxu0 %v1305
        %v1357 = vpop.f32.mrf.mxu0
        %v1358 = vadd.f32 %v1275, %v1357
        %1359 = vmatmul.f32.gmra.mxu0 %v1308
        %v1360 = vpop.f32.mrf.mxu0
        %v1361 = vadd.f32 %v1275, %v1360
        %1362 = vmatmul.f32.gmra.mxu0 %v1311
        %v1363 = vpop.f32.mrf.mxu0
        %v1364 = vadd.f32 %v1275, %v1363
        %1365 = vdwg.mxu0
        %v1366 = vsel %vm1149, %v1331, -inf
        %v1367 = vsel %vm1149, %v1334, -inf
        %v1368 = vsel %vm1149, %v1337, -inf
        %v1369 = vsel %vm1149, %v1340, -inf
        %v1370 = vsel %vm1149, %v1343, -inf
        %v1371 = vmax.f32 %v1366, %v1370
        %v1372 = vsel %vm1149, %v1346, -inf
        %v1373 = vmax.f32 %v1367, %v1372
        %v1374 = vsel %vm1149, %v1349, -inf
        %v1375 = vmax.f32 %v1368, %v1374
        %v1376 = vsel %vm1149, %v1352, -inf
        %v1377 = vmax.f32 %v1369, %v1376
        %v1378 = vsel %vm1149, %v1355, -inf
        %v1379 = vmax.f32 %v1371, %v1378
        %v1380 = vsel %vm1149, %v1358, -inf
        %v1381 = vmax.f32 %v1373, %v1380
        %v1382 = vsel %vm1149, %v1361, -inf
        %v1383 = vmax.f32 %v1375, %v1382
        %v1384 = vsel %vm1149, %v1364, -inf
        %v1385 = vmax.f32 %v1377, %v1384
        %v1386 = vmax.f32 %v1379, %v1381
        %v1387 = vmax.f32 %v1383, %v1385
        %v1388 = vmax.f32 %v1386, %v1387
        %v1389 = vrot.slane %v1388, 4
        %v1390 = vmax.f32 %v1388, %v1389
        %v1391 = vrot.slane %v1390, 2
        %v1392 = vmax.f32 %v1390, %v1391
        %v1393 = vrot.slane %v1392, 1
        %v1394 = vmax.f32 %v1392, %v1393
        %v1395 = vsub.f32 %v1331, %v1394
        %v1396 = vsub.f32 %v1334, %v1394
        %v1397 = vsub.f32 %v1337, %v1394
        %v1398 = vsub.f32 %v1340, %v1394
        %v1399 = vsub.f32 %v1343, %v1394
        %v1400 = vsub.f32 %v1346, %v1394
        %v1401 = vsub.f32 %v1349, %v1394
        %v1402 = vsub.f32 %v1352, %v1394
        %v1403 = vsub.f32 %v1355, %v1394
        %v1404 = vsub.f32 %v1358, %v1394
        %v1405 = vsub.f32 %v1361, %v1394
        %v1406 = vsub.f32 %v1364, %v1394
        %v1407 = vmul.f32 %v1395, 1.442695
        %v1408 = vpow.pop %v1407
        %v1409 = vmul.f32 %v1396, 1.442695
        %v1410 = vpow.pop %v1409
        %v1411 = vmul.f32 %v1397, 1.442695
        %v1412 = vpow.pop %v1411
        %v1413 = vmul.f32 %v1398, 1.442695
        %v1414 = vpow.pop %v1413
        %v1415 = vmul.f32 %v1399, 1.442695
        %v1416 = vpow.pop %v1415
        %v1417 = vmul.f32 %v1400, 1.442695
        %v1418 = vpow.pop %v1417
        %v1419 = vmul.f32 %v1401, 1.442695
        %v1420 = vpow.pop %v1419
        %v1421 = vmul.f32 %v1402, 1.442695
        %v1422 = vpow.pop %v1421
        %v1423 = vmul.f32 %v1403, 1.442695
        %v1424 = vpow.pop %v1423
        %v1425 = vmul.f32 %v1404, 1.442695
        %v1426 = vpow.pop %v1425
        %v1427 = vmul.f32 %v1405, 1.442695
        %v1428 = vpow.pop %v1427
        %v1429 = vmul.f32 %v1406, 1.442695
        %v1430 = vpow.pop %v1429
        %vm1431 = vcmask 785408
        %v1433 = vsel %vm1431, %v506, 0
        %1435 = vmatpush.msra.mxu0 0.0
        %1436 = vmatpush.msra.mxu0 0.0
        %1437 = vmatpush.msra.mxu0 0.0
        %1438 = vmatpush.msra.mxu0 0.0
        %1439 = vmatpush.msra.mxu0 %v1430
        %1440 = vmatpush.msra.mxu0 %v1428
        %1441 = vmatpush.msra.mxu0 %v1426
        %1442 = vmatpush.msra.mxu0 %v1424
        %1443 = vmatpush.msra.mxu0 %v1422
        %1444 = vmatpush.msra.mxu0 %v1420
        %1445 = vmatpush.msra.mxu0 %v1418
        %1446 = vmatpush.msra.mxu0 %v1416
        %1447 = vmatpush.msra.mxu0 %v1414
        %1448 = vmatpush.msra.mxu0 %v1412
        %1449 = vmatpush.msra.mxu0 %v1410
        %1450 = vmatpush.msra.mxu0 %v1408
        %1451 = vmatmul.f32.gmra.mxu0 %v1433
        %v1452 = vpop.f32.mrf.mxu0
        %v1453 = vadd.f32 0.0, %v1452
        %1454 = vdwg.mxu0
        %1455 = vmatpush.msra.mxu0 0.0
        %1456 = vmatpush.msra.mxu0 0.0
        %1457 = vmatpush.msra.mxu0 0.0
        %1458 = vmatpush.msra.mxu0 0.0
        %1459 = vmatpush.msra.mxu0 0.0
        %1460 = vmatpush.msra.mxu0 0.0
        %1461 = vmatpush.msra.mxu0 0.0
        %1462 = vmatpush.msra.mxu0 0.0
        %1463 = vmatpush.msra.mxu0 0.0
        %1464 = vmatpush.msra.mxu0 0.0
        %1465 = vmatpush.msra.mxu0 0.0
        %1466 = vmatpush.msra.mxu0 0.0
        %1467 = vmatpush.msra.mxu0 0.0
        %1468 = vmatpush.msra.mxu0 0.0
        %1469 = vmatpush.msra.mxu0 0.0
        %1470 = vmatpush.msra.mxu0 %v1453
        %1471 = vmatmul.f32.gmra.mxu0 %v748
        %v1472 = vpop.f32.mrf.mxu0
        %v1473 = vadd.f32 0.0, %v1472
        %1474 = vmatmul.f32.gmra.mxu0 %v751
        %v1475 = vpop.f32.mrf.mxu0
        %v1476 = vadd.f32 0.0, %v1475
        %1477 = vmatmul.f32.gmra.mxu0 %v754
        %v1478 = vpop.f32.mrf.mxu0
        %v1479 = vadd.f32 0.0, %v1478
        %1480 = vmatmul.f32.gmra.mxu0 %v757
        %v1481 = vpop.f32.mrf.mxu0
        %v1482 = vadd.f32 0.0, %v1481
        %1483 = vmatmul.f32.gmra.mxu0 %v760
        %v1484 = vpop.f32.mrf.mxu0
        %v1485 = vadd.f32 0.0, %v1484
        %1486 = vmatmul.f32.gmra.mxu0 %v763
        %v1487 = vpop.f32.mrf.mxu0
        %v1488 = vadd.f32 0.0, %v1487
        %1489 = vmatmul.f32.gmra.mxu0 %v766
        %v1490 = vpop.f32.mrf.mxu0
        %v1491 = vadd.f32 0.0, %v1490
        %1492 = vmatmul.f32.gmra.mxu0 %v769
        %v1493 = vpop.f32.mrf.mxu0
        %v1494 = vadd.f32 0.0, %v1493
        %1495 = vmatmul.f32.gmra.mxu0 %v772
        %v1496 = vpop.f32.mrf.mxu0
        %v1497 = vadd.f32 0.0, %v1496
        %1498 = vmatmul.f32.gmra.mxu0 %v775
        %v1499 = vpop.f32.mrf.mxu0
        %v1500 = vadd.f32 0.0, %v1499
        %1501 = vmatmul.f32.gmra.mxu0 %v778
        %v1502 = vpop.f32.mrf.mxu0
        %v1503 = vadd.f32 0.0, %v1502
        %1504 = vmatmul.f32.gmra.mxu0 %v781
        %v1505 = vpop.f32.mrf.mxu0
        %v1506 = vadd.f32 0.0, %v1505
        %1507 = vdwg.mxu0
        %v1508 = vrcp.pop %v1473
        %v1509 = vrcp.pop %v1476
        %v1510 = vrcp.pop %v1479
        %v1511 = vrcp.pop %v1482
        %v1512 = vrcp.pop %v1485
        %v1513 = vrcp.pop %v1488
        %v1514 = vrcp.pop %v1491
        %v1515 = vrcp.pop %v1494
        %v1516 = vrcp.pop %v1497
        %v1517 = vrcp.pop %v1500
        %v1518 = vrcp.pop %v1503
        %v1519 = vrcp.pop %v1506
        %v1520 = vmul.f32 %v1408, %v1508
        %v1521 = vmul.f32 %v1410, %v1509
        %v1522 = vmul.f32 %v1412, %v1510
        %v1523 = vmul.f32 %v1414, %v1511
        %v1524 = vmul.f32 %v1416, %v1512
        %v1525 = vmul.f32 %v1418, %v1513
        %v1526 = vmul.f32 %v1420, %v1514
        %v1527 = vmul.f32 %v1422, %v1515
        %v1528 = vmul.f32 %v1424, %v1516
        %v1529 = vmul.f32 %v1426, %v1517
        %v1530 = vmul.f32 %v1428, %v1518
        %v1531 = vmul.f32 %v1430, %v1519
        %v1533 = vsel %vm1149, %v1520, 0
        %v1536 = vsel %vm1149, %v1521, 0
        %v1539 = vsel %vm1149, %v1522, 0
        %v1542 = vsel %vm1149, %v1523, 0
        %v1545 = vsel %vm1149, %v1524, 0
        %v1548 = vsel %vm1149, %v1525, 0
        %v1551 = vsel %vm1149, %v1526, 0
        %v1554 = vsel %vm1149, %v1527, 0
        %v1557 = vsel %vm1149, %v1528, 0
        %v1560 = vsel %vm1149, %v1529, 0
        %v1563 = vsel %vm1149, %v1530, 0
        %v1566 = vsel %vm1149, %v1531, 0
        %v1569 = vsel %vm873, %v685, 0
        %1571 = vmatpush.msra.mxu0 0.0
        %1572 = vmatpush.msra.mxu0 0.0
        %1573 = vmatpush.msra.mxu0 0.0
        %1574 = vmatpush.msra.mxu0 0.0
        %1575 = vmatpush.msra.mxu0 0.0
        %1576 = vmatpush.msra.mxu0 0.0
        %1577 = vmatpush.msra.mxu0 0.0
        %1578 = vmatpush.msra.mxu0 0.0
        %1579 = vmatpush.msra.mxu0 0.0
        %1580 = vmatpush.msra.mxu0 0.0
        %1581 = vmatpush.msra.mxu0 0.0
        %1582 = vmatpush.msra.mxu0 0.0
        %1583 = vmatpush.msra.mxu0 0.0
        %1584 = vmatpush.msra.mxu0 0.0
        %1585 = vmatpush.msra.mxu0 0.0
        %1586 = vmatpush.msra.mxu0 %v1569
        %1587 = vmatmul.f32.gmra.mxu0 %v1533
        %v1588 = vpop.f32.mrf.mxu0
        %v1589 = vadd.f32 0.0, %v1588
        %1590 = vmatmul.f32.gmra.mxu0 %v1536
        %v1591 = vpop.f32.mrf.mxu0
        %v1592 = vadd.f32 0.0, %v1591
        %1593 = vmatmul.f32.gmra.mxu0 %v1539
        %v1594 = vpop.f32.mrf.mxu0
        %v1595 = vadd.f32 0.0, %v1594
        %1596 = vmatmul.f32.gmra.mxu0 %v1542
        %v1597 = vpop.f32.mrf.mxu0
        %v1598 = vadd.f32 0.0, %v1597
        %1599 = vmatmul.f32.gmra.mxu0 %v1545
        %v1600 = vpop.f32.mrf.mxu0
        %v1601 = vadd.f32 0.0, %v1600
        %1602 = vmatmul.f32.gmra.mxu0 %v1548
        %v1603 = vpop.f32.mrf.mxu0
        %v1604 = vadd.f32 0.0, %v1603
        %1605 = vmatmul.f32.gmra.mxu0 %v1551
        %v1606 = vpop.f32.mrf.mxu0
        %v1607 = vadd.f32 0.0, %v1606
        %1608 = vmatmul.f32.gmra.mxu0 %v1554
        %v1609 = vpop.f32.mrf.mxu0
        %v1610 = vadd.f32 0.0, %v1609
        %1611 = vmatmul.f32.gmra.mxu0 %v1557
        %v1612 = vpop.f32.mrf.mxu0
        %v1613 = vadd.f32 0.0, %v1612
        %1614 = vmatmul.f32.gmra.mxu0 %v1560
        %v1615 = vpop.f32.mrf.mxu0
        %v1616 = vadd.f32 0.0, %v1615
        %1617 = vmatmul.f32.gmra.mxu0 %v1563
        %v1618 = vpop.f32.mrf.mxu0
        %v1619 = vadd.f32 0.0, %v1618
        %1620 = vmatmul.f32.gmra.mxu0 %v1566
        %v1621 = vpop.f32.mrf.mxu0
        %v1622 = vadd.f32 0.0, %v1621
        %1623 = vdwg.mxu0
        %1636 = vrot.lane.b32.xlu0 %v895, 96
        %v1637 = vpop.permute.xlu0 %1636
        %1638 = vrot.lane.b32.xlu0 %v898, 96
        %v1639 = vpop.permute.xlu0 %1638
        %1640 = vrot.lane.b32.xlu0 %v901, 96
        %v1641 = vpop.permute.xlu0 %1640
        %1642 = vrot.lane.b32.xlu0 %v904, 96
        %v1643 = vpop.permute.xlu0 %1642
        %1644 = vrot.lane.b32.xlu0 %v907, 96
        %v1645 = vpop.permute.xlu0 %1644
        %1646 = vrot.lane.b32.xlu0 %v910, 96
        %v1647 = vpop.permute.xlu0 %1646
        %1648 = vrot.lane.b32.xlu0 %v913, 96
        %v1649 = vpop.permute.xlu0 %1648
        %1650 = vrot.lane.b32.xlu0 %v916, 96
        %v1651 = vpop.permute.xlu0 %1650
        %1652 = vrot.lane.b32.xlu0 %v919, 96
        %v1653 = vpop.permute.xlu0 %1652
        %1654 = vrot.lane.b32.xlu0 %v922, 96
        %v1655 = vpop.permute.xlu0 %1654
        %1656 = vrot.lane.b32.xlu0 %v925, 96
        %v1657 = vpop.permute.xlu0 %1656
        %1658 = vrot.lane.b32.xlu0 %v928, 96
        %v1659 = vpop.permute.xlu0 %1658
        %v1672 = vmul.f32 %v1589, %v1637
        %v1673 = vmul.f32 %v1592, %v1639
        %v1674 = vmul.f32 %v1595, %v1641
        %v1675 = vmul.f32 %v1598, %v1643
        %v1676 = vmul.f32 %v1601, %v1645
        %v1677 = vmul.f32 %v1604, %v1647
        %v1678 = vmul.f32 %v1607, %v1649
        %v1679 = vmul.f32 %v1610, %v1651
        %v1680 = vmul.f32 %v1613, %v1653
        %v1681 = vmul.f32 %v1616, %v1655
        %v1682 = vmul.f32 %v1619, %v1657
        %v1683 = vmul.f32 %v1622, %v1659
        %1684 = vmatpush.msra.mxu0 0.0
        %1685 = vmatpush.msra.mxu0 0.0
        %1686 = vmatpush.msra.mxu0 0.0
        %1687 = vmatpush.msra.mxu0 0.0
        %1688 = vmatpush.msra.mxu0 %v1683
        %1689 = vmatpush.msra.mxu0 %v1682
        %1690 = vmatpush.msra.mxu0 %v1681
        %1691 = vmatpush.msra.mxu0 %v1680
        %1692 = vmatpush.msra.mxu0 %v1679
        %1693 = vmatpush.msra.mxu0 %v1678
        %1694 = vmatpush.msra.mxu0 %v1677
        %1695 = vmatpush.msra.mxu0 %v1676
        %1696 = vmatpush.msra.mxu0 %v1675
        %1697 = vmatpush.msra.mxu0 %v1674
        %1698 = vmatpush.msra.mxu0 %v1673
        %1699 = vmatpush.msra.mxu0 %v1672
        %1700 = vmatmul.f32.gmra.mxu0 %v1433
        %v1701 = vpop.f32.mrf.mxu0
        %v1702 = vadd.f32 0.0, %v1701
        %1703 = vdwg.mxu0
        %v1704 = vld [vmem:[%s10] sm:$0x1]
        %v1705 = vld [vmem:[%s7] sm:$0xff]
        %v1706 = vld [vmem:[%s7 + $0x8] sm:$0xff]
        %v1707 = vld [vmem:[%s7 + $0x10] sm:$0xff]
        %v1708 = vld [vmem:[%s7 + $0x18] sm:$0xff]
        %v1709 = vperm.slane %v1704, 0
        %v1711 = vsel %vm690, %v1702, 0
        %1713 = vmatpush.msra.mxu0 0.0
        %1714 = vmatpush.msra.mxu0 0.0
        %1715 = vmatpush.msra.mxu0 0.0
        %1716 = vmatpush.msra.mxu0 0.0
        %1717 = vmatpush.msra.mxu0 0.0
        %1718 = vmatpush.msra.mxu0 0.0
        %1719 = vmatpush.msra.mxu0 0.0
        %1720 = vmatpush.msra.mxu0 0.0
        %1721 = vmatpush.msra.mxu0 0.0
        %1722 = vmatpush.msra.mxu0 0.0
        %1723 = vmatpush.msra.mxu0 0.0
        %1724 = vmatpush.msra.mxu0 0.0
        %1725 = vmatpush.msra.mxu0 %v1708
        %1726 = vmatpush.msra.mxu0 %v1707
        %1727 = vmatpush.msra.mxu0 %v1706
        %1728 = vmatpush.msra.mxu0 %v1705
        %1729 = vmatmul.f32.gmra.mxu0 %v1711
        %v1730 = vpop.f32.mrf.mxu0
        %v1731 = vadd.f32 %v1709, %v1730
        %1732 = vdwg.mxu0
        %v1733 = vadd.f32 %v419, %v1731
        %v1734 = vld [vmem:[%s10 + $0x1] sm:$0x1]
        %v1735 = vld [vmem:[%s10 + $0x2] sm:$0x1]
        %v1736 = vsel %vm690, %v1733, 0.0
        %v1737 = vrot.slane %v1736, 4
        %v1738 = vadd.f32 %v1736, %v1737
        %v1739 = vrot.slane %v1738, 2
        %v1740 = vadd.f32 %v1738, %v1739
        %v1741 = vrot.slane %v1740, 1
        %v1742 = vadd.f32 %v1740, %v1741
        %v1743 = vrcp.pop 8.0
        %v1744 = vmul.f32 8.0, %v1743
        %v1745 = vsub.f32 1.0, %v1744
        %v1746 = vmul.f32 %v1743, %v1745
        %v1747 = vadd.f32 %v1743, %v1746
        %vm1748 = vweird.f32 %v1743
        %v1749 = vsel %vm1748, %v1743, %v1747
        %v1750 = vmul.f32 %v1742, %v1749
        %v1751 = vsub.f32 %v1733, %v1750
        %v1752 = vmul.f32 %v1751, %v1751
        %v1753 = vsel %vm690, %v1752, 0.0
        %v1754 = vrot.slane %v1753, 4
        %v1755 = vadd.f32 %v1753, %v1754
        %v1756 = vrot.slane %v1755, 2
        %v1757 = vadd.f32 %v1755, %v1756
        %v1758 = vrot.slane %v1757, 1
        %v1759 = vadd.f32 %v1757, %v1758
        %v1760 = vmul.f32 %v1759, %v1749
        %v1761 = vadd.f32 %v1760, 1e-05
        %v1762 = vrsqrt.pop %v1761
        %v1763 = vmul.f32 %v1762, %v1761
        %v1764 = vmul.f32 %v1763, %v1762
        %v1765 = vmul.f32 0.5, %v1764
        %v1766 = vsub.f32 1.5, %v1765
        %v1767 = vmul.f32 %v1762, %v1766
        %vm1768 = vweird.f32 %v1761
        %vm1769 = vweird.f32 %v1762
        %vm1770 = vmor %vm1768, %vm1769
        %v1771 = vsel %vm1770, %v1762, %v1767
        %v1772 = vmul.f32 %v1751, %v1771
        %v1773 = vperm.slane %v1734, 0
        %v1774 = vmul.f32 %v1772, %v1773
        %v1775 = vperm.slane %v1735, 0
        %v1776 = vadd.f32 %v1774, %v1775
        %v1777 = vld [vmem:[%s8] sm:$0xff]
        %v1778 = vld [vmem:[%s8 + $0x8] sm:$0xff]
        %v1779 = vld [vmem:[%s8 + $0x10] sm:$0xff]
        %v1780 = vld [vmem:[%s8 + $0x18] sm:$0xff]
        %v1781 = vld [vmem:[%s10 + $0x3] sm:$0x1]
        %v1782 = vperm.slane %v1781, 0
        %v1784 = vsel %vm690, %v1776, 0
        %1786 = vmatpush.msra.mxu0 0.0
        %1787 = vmatpush.msra.mxu0 0.0
        %1788 = vmatpush.msra.mxu0 0.0
        %1789 = vmatpush.msra.mxu0 0.0
        %1790 = vmatpush.msra.mxu0 0.0
        %1791 = vmatpush.msra.mxu0 0.0
        %1792 = vmatpush.msra.mxu0 0.0
        %1793 = vmatpush.msra.mxu0 0.0
        %1794 = vmatpush.msra.mxu0 0.0
        %1795 = vmatpush.msra.mxu0 0.0
        %1796 = vmatpush.msra.mxu0 0.0
        %1797 = vmatpush.msra.mxu0 0.0
        %1798 = vmatpush.msra.mxu0 %v1780
        %1799 = vmatpush.msra.mxu0 %v1779
        %1800 = vmatpush.msra.mxu0 %v1778
        %1801 = vmatpush.msra.mxu0 %v1777
        %1802 = vmatmul.f32.gmra.mxu0 %v1784
        %v1803 = vpop.f32.mrf.mxu0
        %v1804 = vadd.f32 %v1782, %v1803
        %1805 = vdwg.mxu0
        %v1806 = vmax.f32 %v1804, 0.0
        %v1807 = vld [vmem:[%s9] sm:$0xff]
        %v1808 = vld [vmem:[%s9 + $0x8] sm:$0xff]
        %v1809 = vld [vmem:[%s9 + $0x10] sm:$0xff]
        %v1810 = vld [vmem:[%s9 + $0x18] sm:$0xff]
        %v1811 = vld [vmem:[%s9 + $0x20] sm:$0xff]
        %v1812 = vld [vmem:[%s9 + $0x28] sm:$0xff]
        %v1813 = vld [vmem:[%s9 + $0x30] sm:$0xff]
        %v1814 = vld [vmem:[%s9 + $0x38] sm:$0xff]
        %v1815 = vld [vmem:[%s10 + $0x4] sm:$0x1]
        %v1816 = vperm.slane %v1815, 0
        %v1818 = vsel %vm1276, %v1806, 0
        %1820 = vmatpush.msra.mxu0 0.0
        %1821 = vmatpush.msra.mxu0 0.0
        %1822 = vmatpush.msra.mxu0 0.0
        %1823 = vmatpush.msra.mxu0 0.0
        %1824 = vmatpush.msra.mxu0 0.0
        %1825 = vmatpush.msra.mxu0 0.0
        %1826 = vmatpush.msra.mxu0 0.0
        %1827 = vmatpush.msra.mxu0 0.0
        %1828 = vmatpush.msra.mxu0 %v1814
        %1829 = vmatpush.msra.mxu0 %v1813
        %1830 = vmatpush.msra.mxu0 %v1812
        %1831 = vmatpush.msra.mxu0 %v1811
        %1832 = vmatpush.msra.mxu0 %v1810
        %1833 = vmatpush.msra.mxu0 %v1809
        %1834 = vmatpush.msra.mxu0 %v1808
        %1835 = vmatpush.msra.mxu0 %v1807
        %1836 = vmatmul.f32.gmra.mxu0 %v1818
        %v1837 = vpop.f32.mrf.mxu0
        %v1838 = vadd.f32 %v1816, %v1837
        %1839 = vdwg.mxu0
        %v1840 = vadd.f32 %v1776, %v1838
        %v1841 = vld [vmem:[%s10 + $0x5] sm:$0x1]
        %v1842 = vld [vmem:[%s10 + $0x6] sm:$0x1]
        %v1843 = vsel %vm690, %v1840, 0.0
        %v1844 = vrot.slane %v1843, 4
        %v1845 = vadd.f32 %v1843, %v1844
        %v1846 = vrot.slane %v1845, 2
        %v1847 = vadd.f32 %v1845, %v1846
        %v1848 = vrot.slane %v1847, 1
        %v1849 = vadd.f32 %v1847, %v1848
        %v1850 = vmul.f32 %v1849, %v1749
        %v1851 = vsub.f32 %v1840, %v1850
        %v1852 = vmul.f32 %v1851, %v1851
        %v1853 = vsel %vm690, %v1852, 0.0
        %v1854 = vrot.slane %v1853, 4
        %v1855 = vadd.f32 %v1853, %v1854
        %v1856 = vrot.slane %v1855, 2
        %v1857 = vadd.f32 %v1855, %v1856
        %v1858 = vrot.slane %v1857, 1
        %v1859 = vadd.f32 %v1857, %v1858
        %v1860 = vmul.f32 %v1859, %v1749
        %v1861 = vadd.f32 %v1860, 1e-05
        %v1862 = vrsqrt.pop %v1861
        %v1863 = vmul.f32 %v1862, %v1861
        %v1864 = vmul.f32 %v1863, %v1862
        %v1865 = vmul.f32 0.5, %v1864
        %v1866 = vsub.f32 1.5, %v1865
        %v1867 = vmul.f32 %v1862, %v1866
        %vm1868 = vweird.f32 %v1861
        %vm1869 = vweird.f32 %v1862
        %vm1870 = vmor %vm1868, %vm1869
        %v1871 = vsel %vm1870, %v1862, %v1867
        %v1872 = vmul.f32 %v1851, %v1871
        %v1873 = vperm.slane %v1841, 0
        %v1874 = vmul.f32 %v1872, %v1873
        %v1875 = vperm.slane %v1842, 0
        %v1876 = vadd.f32 %v1874, %v1875
        %1877 = vst.msk [vmem:[%s405] sm:$0xff] %vm690, %v1876
        %s1878 = sand.u32 %s279, 1
        %s1879 = scalar_lea.sflag [#allocation3], %s1878
        %s1880 = sand.u32 %s279, 1
        %s1881 = smul.addr %s1880, 8
        %s1882 = scalar_lea.vmem [#allocation2], %s1881
        // Predicated region
        $region65: #{encoding_block.1} parent=63 // pred_check
          %p1883 = pneg %p289
        $region66: #{encoding_block.1} parent=63 // pred_check_branch
          %1885 = sbr.rel (%p1883) target = $region68
        $region67: #{encoding_block.1} parent=63 // pred_region
          %1887 = vsyncadd %s1879, 0
          %s1888 = smul.addr %s25, 8
          %s1889 = scalar_lea.hbm %s11, %s1888
          %s1891 = sshll.u32 %s1882, 4
          %s1892 = int_to_ptr.vmem [resolvable:$true] %s1891
          %s1893 = sshll.u32 %s1889, 4
          %s1894 = int_to_ptr.hbm [resolvable:$true] %s1893
          %1896 = dma.vmem_to_hbm [thread:$0]  %s1892, 128, %s1894, %s1879
        $region68: #{encoding_block.1} parent=63 // pred_fallthru
          _
      $region64: #{encoding_block.1} parent=5 // pred_fallthru
        _
      %p1897 = scmp.le.s32.totalorder 2, %s20
      // Predicated region
      $region69: #{encoding_block.1} parent=5 // pred_check
        %p1898 = pneg %p1897
      $region70: #{encoding_block.1} parent=5 // pred_check_branch
        %1900 = sbr.rel (%p1898) target = $region72
      $region71: #{encoding_block.1} parent=5 // pred_region
        %s1901 = ssub.s32 %s20, 2
        // Predicated region
        $region73: #{encoding_block.1} parent=71 // pred_check
          %p1902 = pneg %p295
        $region74: #{encoding_block.1} parent=71 // pred_check_branch
          %1904 = sbr.rel (%p1902) target = $region76
        $region75: #{encoding_block.1} parent=71 // pred_region
          %s1905 = sand.u32 %s280, 1
          %s1906 = scalar_lea.sflag [#allocation3], %s1905
          %s1907 = sand.u32 %s280, 1
          %s1908 = smul.addr %s1907, 8
          %s1909 = scalar_lea.vmem [#allocation2], %s1908
          %1911 = dma.done %s1906, 128
        $region76: #{encoding_block.1} parent=71 // pred_fallthru
          _
      $region72: #{encoding_block.1} parent=5 // pred_fallthru
        _
    $region6: #{encoding_block.1} parent=1 // loop_footer
      %s24 = sadd.s32 1, %s20
    $region7: #{encoding_block.1} parent=1 // loop_footer_branch
      %19 = sbr.rel target = $region3
    $region8: #{encoding_block.1} parent=1 // loop_exit
      _
    %1912 = vsyncpa [#allocation3], 1
    %s1913 = scalar_lea.sflag [#allocation3], 1
    %1914 = vsyncpa %s1913, 1

</llo_original>
